<compile_context>
chip_gen: v7x
topology: tpu7x:2x2x1
jax: 0.10.0
libtpu: 0.0.40
codegen_flags: <defaults>
</compile_context>

<pallas_src>
import math

import jax
import jax.numpy as jnp
from jax import lax
from jax.experimental import pallas as pl
from jax.experimental.pallas import tpu as pltpu


def _round_up(x, m):
    return ((x + m - 1) // m) * m


def att_diff_kernel(xf_ref, w1_ref, b1_ref, a1_ref, w2_ref, b2_ref,
                    a2_ref, w3_ref, b3_ref, out_ref):
    """One batch tile of the full forward pass.

    xf_ref : VMEM (TB, P*Dp) bf16  -- flattened, zero-padded input tile (single x stream)
    w*_ref : VMEM bf16             -- Linear weights (in, out), zero-padded to lane width
    b*_ref : VMEM (1, ...)   f32   -- biases; b3's padded columns hold -1e30
    a*_ref : VMEM (1, Hp)    f32   -- PReLU slopes broadcast to the hidden width
    out_ref: VMEM (TB, Dp)   f32
    """
    Dp = out_ref.shape[1]
    P = xf_ref.shape[1] // Dp          # real phone count (padded phones live only in logits)

    xf_bf = xf_ref[...]                # bf16 tile, fed straight to the MXU

    # ---- attention MLP: al1 -> PReLU -> al2 -> PReLU -> al3 (bf16 MXU, f32 accum) ----
    h1 = jnp.dot(xf_bf, w1_ref[...], preferred_element_type=jnp.float32) + b1_ref[...]
    h1 = jnp.where(h1 >= 0.0, h1, a1_ref[...] * h1)                       # PReLU (f32)

    h2 = jnp.dot(h1.astype(jnp.bfloat16), w2_ref[...],
                 preferred_element_type=jnp.float32) + b2_ref[...]
    h2 = jnp.where(h2 >= 0.0, h2, a2_ref[...] * h2)                       # PReLU (f32)

    logits = jnp.dot(h2.astype(jnp.bfloat16), w3_ref[...],
                     preferred_element_type=jnp.float32) + b3_ref[...]    # (TB, Pp)

    # ---- softmax over phones WITHOUT the 1/sum: the per-row positive scale cancels
    #      exactly in the final L2 normalize (saves an XLU reduce + EUP recip + VPU mul).
    #      Padded logits columns carry bias -1e30 -> max() ignores them and
    #      exp(-1e30 - m) underflows to exactly 0, so they never pollute the pooling. ----
    m = jnp.max(logits, axis=1, keepdims=True)
    ex = jnp.exp(logits - m)                                              # (TB, Pp)

    # ---- attention pooling: bmm(att[B,1,P], x[B,P,D]) -> (B, D) ----
    # Direct per-phone broadcast-MAC over the lane-aligned Dp chunks of the streamed
    # tile: 2*TB*P*Dp VPU flops, no expansion matmul, no (TB, P*Dp) f32 intermediates.
    pooled = ex[:, 0:1] * xf_ref[:, 0:Dp].astype(jnp.float32)
    for p in range(1, P):
        pooled = pooled + ex[:, p:p + 1] * xf_ref[:, p * Dp:(p + 1) * Dp].astype(jnp.float32)

    # ---- F.normalize(p=2, dim=1) * sqrt(phone_num); rsqrt on the EUP ----
    ss = jnp.sum(pooled * pooled, axis=1, keepdims=True)
    inv = lax.rsqrt(jnp.maximum(ss, 1e-24))        # == 1 / max(||pooled||, 1e-12)
    out_ref[...] = pooled * (inv * (P ** 0.5))


def att_diff_dnn_forward(x, params, *, tb=256):
    """x: (B, phone_num, ivector_dim) float32 -> (B, ivector_dim) float32."""
    B, P, D = x.shape
    H = params["w1"].shape[1]
    f32, bf16 = jnp.float32, jnp.bfloat16

    # Lane-dense padding (exact: zero rows/cols, PReLU(0)=0, exp(-1e30)=0).
    # NOTE: per-phone padding D -> Dp keeps every pooling chunk 128-lane aligned; it is
    # near-free for production i-vector dims (600 -> 640) but costs Dp/D extra x traffic
    # and w1 K-width when D << 128 (demo 48 -> 128).
    # TODO(synk): for D << 128, use a packed round_up(P*D, 128) layout for the MLP path
    # (pad only w1 rows) and confine Dp-padding to the pooling path.
    Dp = _round_up(D, 128)
    Hp = _round_up(H, 128)
    Pp = _round_up(P, 128)             # lane-dense logits / softmax width
    PDp = P * Dp

    # Batch tile: multiple of 8 sublanes; keep the grid length even so the "parallel"
    # batch axis splits cleanly across v7x's two TensorCores.
    tb = _round_up(max(8, min(tb, _round_up(B, 8))), 8)
    Bp = _round_up(B, tb)
    if (Bp // tb) > 1 and (Bp // tb) % 2 == 1:
        Bp += tb

    # ---- activations: pad batch + ivector dim, flatten, stream as bf16 (halves the
    #      dominant HBM->VMEM DMA; the pooling up-casts each chunk back to f32) ----
    xf = jnp.pad(x.astype(f32), ((0, Bp - B), (0, 0), (0, Dp - D)))
    xf = xf.astype(bf16).reshape(Bp, PDp)

    # ---- parameters: zero-pad (exact) and cast weights to bf16 ----
    w1 = params["w1"].reshape(P, D, H)
    w1 = jnp.pad(w1, ((0, 0), (0, Dp - D), (0, Hp - H))).reshape(PDp, Hp).astype(bf16)
    b1 = jnp.pad(params["b1"].astype(f32), ((0, 0), (0, Hp - H)))
    w2 = jnp.pad(params["w2"], ((0, Hp - H), (0, Hp - H))).astype(bf16)
    b2 = jnp.pad(params["b2"].astype(f32), ((0, 0), (0, Hp - H)))
    w3 = jnp.pad(params["w3"], ((0, Hp - H), (0, Pp - P))).astype(bf16)
    # Padded logits columns get a large finite negative bias (NOT -inf, to avoid
    # inf-inf NaNs in the max-subtraction); exp then underflows to exactly 0.
    b3 = jnp.pad(params["b3"].astype(f32), ((0, 0), (0, Pp - P)), constant_values=-1e30)
    a1 = jnp.full((1, Hp), params["alpha1"], f32)
    a2 = jnp.full((1, Hp), params["alpha2"], f32)

    # TODO(synk): at production phone_num*ivector_dim, stream w1 over a K-axis grid
    # dimension with an f32 VMEM accumulator, and single-buffer the resident weights
    # (pipeline_mode=pl.Buffered(1)) to fit within v7x's 64 MiB VMEM.
    grid = (Bp // tb,)
    const = lambda i: (0, 0)                                      # resident operands

    flops = (2 * Bp * (PDp * Hp + Hp * Hp + Hp * Pp)              # three matmuls
             + Bp * (4 * Hp + 3 * Pp + 3 * PDp + 3 * Dp))         # PReLU/softmax/pool/norm
    transcendentals = Bp * (Pp + 1)
    bytes_accessed = (2 * Bp * PDp + 4 * Bp * Dp                  # streamed x + output
                      + 2 * (PDp * Hp + Hp * Hp + Hp * Pp)        # bf16 weights
                      + 4 * (3 * Hp + Pp))                        # f32 biases + alphas

    out = pl.pallas_call(
        att_diff_kernel,
        out_shape=jax.ShapeDtypeStruct((Bp, Dp), f32),
        grid_spec=pltpu.PrefetchScalarGridSpec(
            num_scalar_prefetch=0,
            grid=grid,
            in_specs=[
                pl.BlockSpec((tb, PDp), lambda i: (i, 0)),   # x tile (streamed over batch)
                pl.BlockSpec((PDp, Hp), const),              # w1       (resident)
                pl.BlockSpec((1, Hp), const),                # b1
                pl.BlockSpec((1, Hp), const),                # PReLU alpha1
                pl.BlockSpec((Hp, Hp), const),               # w2
                pl.BlockSpec((1, Hp), const),                # b2
                pl.BlockSpec((1, Hp), const),                # PReLU alpha2
                pl.BlockSpec((Hp, Pp), const),               # w3 (logits padded to 128)
                pl.BlockSpec((1, Pp), const),                # b3 (-1e30 in padded cols)
            ],
            out_specs=pl.BlockSpec((tb, Dp), lambda i: (i, 0)),
        ),
        compiler_params=pltpu.CompilerParams(
            dimension_semantics=("parallel",),               # batch axis -> v7x's 2 TCs
            vmem_limit_bytes=64 * 1024 * 1024,
        ),
        cost_estimate=pl.CostEstimate(flops=flops,
                                      transcendentals=transcendentals,
                                      bytes_accessed=bytes_accessed),
    )(xf, w1, b1, a1, w2, b2, a2, w3, b3)

    return out[:B, :D]


def init_params(key, ivector_dim, phone_num, n_hidden_1):
    """Deterministic synthetic params; shapes mirror the PyTorch module.

    PyTorch nn.Linear weight is (out, in); we store the transpose (in, out) so the
    kernel computes x @ W + b directly.  PReLU default slope = 0.25 (single shared).
    """
    in1 = ivector_dim * phone_num
    ks = jax.random.split(key, 6)

    def lin(kw, kb, fan_in, fan_out):
        bound = 1.0 / math.sqrt(fan_in)
        w = jax.random.uniform(kw, (fan_in, fan_out), jnp.float32, -bound, bound)
        b = jax.random.uniform(kb, (1, fan_out), jnp.float32, -bound, bound)
        return w, b

    w1, b1 = lin(ks[0], ks[1], in1, n_hidden_1)
    w2, b2 = lin(ks[2], ks[3], n_hidden_1, n_hidden_1)
    w3, b3 = lin(ks[4], ks[5], n_hidden_1, phone_num)
    return dict(w1=w1, b1=b1, w2=w2, b2=b2, w3=w3, b3=b3,
                alpha1=jnp.float32(0.25), alpha2=jnp.float32(0.25))


def reference_forward(x, params):
    """Plain-JAX reference.

    The MLP uses the same bf16 operand casting as the kernel, but the softmax is the
    full normalized softmax and the pooling/normalize use the true f32 x, so the test
    exercises both the dropped-denominator trick and the kernel's bf16 x streaming.
    """
    B, P, D = x.shape
    bf16, f32 = jnp.bfloat16, jnp.float32
    xf = x.reshape(B, P * D).astype(bf16)
    h1 = jnp.dot(xf, params["w1"].astype(bf16), preferred_element_type=f32) + params["b1"]
    h1 = jnp.where(h1 >= 0, h1, params["alpha1"] * h1)
    h2 = jnp.dot(h1.astype(bf16), params["w2"].astype(bf16),
                 preferred_element_type=f32) + params["b2"]
    h2 = jnp.where(h2 >= 0, h2, params["alpha2"] * h2)
    logits = jnp.dot(h2.astype(bf16), params["w3"].astype(bf16),
                     preferred_element_type=f32) + params["b3"]
    att = jax.nn.softmax(logits, axis=1)
    pooled = jnp.einsum("bp,bpd->bd", att, x)
    norm = jnp.maximum(jnp.sqrt(jnp.sum(pooled * pooled, axis=1, keepdims=True)), 1e-12)
    return pooled / norm * (P ** 0.5)


if __name__ == "__main__":
    # Small shapes consistent with the module: x is (batch, phone_num, ivector_dim).
    B, phone_num, ivector_dim, n_hidden_1 = 12, 8, 48, 32

    key = jax.random.PRNGKey(0)
    kx, kp = jax.random.split(key)
    x = jax.random.normal(kx, (B, phone_num, ivector_dim), dtype=jnp.float32)
    params = init_params(kp, ivector_dim, phone_num, n_hidden_1)

    # tb=8 -> padded batch 16, 2-step (even-length) pipelined batch grid for the demo.
    out = att_diff_dnn_forward(x, params, tb=8)
    out = jax.block_until_ready(out)

    ref = reference_forward(x, params)
    assert out.shape == (B, ivector_dim)
    max_diff = float(jnp.max(jnp.abs(out - ref)))
    # 1e-2 tolerance: the kernel streams x as bf16 (one rounding, ~2^-9 relative input
    # error), so the pooled/normalized output differs from the f32-pooled reference by
    # a few 1e-3 at most; everything else matches the reference's casting exactly.
    assert jnp.allclose(out, ref, atol=1e-2, rtol=1e-2), (
        f"mismatch vs JAX reference, max abs diff = {max_diff}")

    print("KERNEL_OK")
</pallas_src>

<mosaic_0001>
module attributes {stable_mosaic.version = 11 : i64} {
  func.func @att_diff_kernel(%arg0: i32, %arg1: memref<8x1024xbf16, #tpu.memory_space<vmem>>, %arg2: memref<1024x128xbf16, #tpu.memory_space<vmem>>, %arg3: memref<1x128xf32, #tpu.memory_space<vmem>>, %arg4: memref<1x128xf32, #tpu.memory_space<vmem>>, %arg5: memref<128x128xbf16, #tpu.memory_space<vmem>>, %arg6: memref<1x128xf32, #tpu.memory_space<vmem>>, %arg7: memref<1x128xf32, #tpu.memory_space<vmem>>, %arg8: memref<128x128xbf16, #tpu.memory_space<vmem>>, %arg9: memref<1x128xf32, #tpu.memory_space<vmem>>, %arg10: memref<8x128xf32, #tpu.memory_space<vmem>>) attributes {dimension_semantics = [#tpu.dimension_semantics<parallel>], iteration_bounds = array<i64: 2>, scalar_prefetch = 0 : i64, scratch_operands = 0 : i64, tpu.core_type = #tpu.core_type<tc>, window_params = [{transform_indices = @transform_0, window_bounds = array<i64: 8, 1024>}, {pipeline_mode = #tpu.pipeline_mode<synchronous>, transform_indices = @transform_1, window_bounds = array<i64: 1024, 128>}, {pipeline_mode = #tpu.pipeline_mode<synchronous>, transform_indices = @transform_2, window_bounds = array<i64: 1, 128>}, {pipeline_mode = #tpu.pipeline_mode<synchronous>, transform_indices = @transform_3, window_bounds = array<i64: 1, 128>}, {pipeline_mode = #tpu.pipeline_mode<synchronous>, transform_indices = @transform_4, window_bounds = array<i64: 128, 128>}, {pipeline_mode = #tpu.pipeline_mode<synchronous>, transform_indices = @transform_5, window_bounds = array<i64: 1, 128>}, {pipeline_mode = #tpu.pipeline_mode<synchronous>, transform_indices = @transform_6, window_bounds = array<i64: 1, 128>}, {pipeline_mode = #tpu.pipeline_mode<synchronous>, transform_indices = @transform_7, window_bounds = array<i64: 128, 128>}, {pipeline_mode = #tpu.pipeline_mode<synchronous>, transform_indices = @transform_8, window_bounds = array<i64: 1, 128>}, {transform_indices = @transform_9, window_bounds = array<i64: 8, 128>}]} {
    %c0 = arith.constant 0 : index
    %c0_0 = arith.constant 0 : index
    %0 = vector.load %arg1[%c0, %c0_0] : memref<8x1024xbf16, #tpu.memory_space<vmem>>, vector<8x1024xbf16>
    %c0_1 = arith.constant 0 : index
    %c0_2 = arith.constant 0 : index
    %1 = vector.load %arg2[%c0_1, %c0_2] : memref<1024x128xbf16, #tpu.memory_space<vmem>>, vector<1024x128xbf16>
    %cst = arith.constant dense<0.000000e+00> : vector<8x128xf32>
    %2 = tpu.matmul %0, %1, %cst {dimension_numbers = #tpu.dot_dimension_numbers<[1], [0], [0], [1], [0, 0, 1, 1], [], []>} : vector<8x1024xbf16>, vector<1024x128xbf16>, vector<8x128xf32> -> vector<8x128xf32>
    %c0_3 = arith.constant 0 : index
    %c0_4 = arith.constant 0 : index
    %3 = vector.load %arg3[%c0_3, %c0_4] : memref<1x128xf32, #tpu.memory_space<vmem>>, vector<1x128xf32>
    %4 = vector.broadcast %3 : vector<1x128xf32> to vector<8x128xf32>
    %5 = arith.addf %2, %4 : vector<8x128xf32>
    %cst_5 = arith.constant 0.000000e+00 : f32
    %6 = vector.broadcast %cst_5 : f32 to vector<8x128xf32>
    %7 = arith.cmpf oge, %5, %6 : vector<8x128xf32>
    %c0_6 = arith.constant 0 : index
    %c0_7 = arith.constant 0 : index
    %8 = vector.load %arg4[%c0_6, %c0_7] : memref<1x128xf32, #tpu.memory_space<vmem>>, vector<1x128xf32>
    %9 = vector.broadcast %8 : vector<1x128xf32> to vector<8x128xf32>
    %10 = arith.mulf %9, %5 : vector<8x128xf32>
    %11 = arith.select %7, %5, %10 : vector<8x128xi1>, vector<8x128xf32>
    %12 = arith.truncf %11 : vector<8x128xf32> to vector<8x128xbf16>
    %c0_8 = arith.constant 0 : index
    %c0_9 = arith.constant 0 : index
    %13 = vector.load %arg5[%c0_8, %c0_9] : memref<128x128xbf16, #tpu.memory_space<vmem>>, vector<128x128xbf16>
    %cst_10 = arith.constant dense<0.000000e+00> : vector<8x128xf32>
    %14 = tpu.matmul %12, %13, %cst_10 {dimension_numbers = #tpu.dot_dimension_numbers<[1], [0], [0], [1], [0, 0, 1, 1], [], []>} : vector<8x128xbf16>, vector<128x128xbf16>, vector<8x128xf32> -> vector<8x128xf32>
    %c0_11 = arith.constant 0 : index
    %c0_12 = arith.constant 0 : index
    %15 = vector.load %arg6[%c0_11, %c0_12] : memref<1x128xf32, #tpu.memory_space<vmem>>, vector<1x128xf32>
    %16 = vector.broadcast %15 : vector<1x128xf32> to vector<8x128xf32>
    %17 = arith.addf %14, %16 : vector<8x128xf32>
    %cst_13 = arith.constant 0.000000e+00 : f32
    %18 = vector.broadcast %cst_13 : f32 to vector<8x128xf32>
    %19 = arith.cmpf oge, %17, %18 : vector<8x128xf32>
    %c0_14 = arith.constant 0 : index
    %c0_15 = arith.constant 0 : index
    %20 = vector.load %arg7[%c0_14, %c0_15] : memref<1x128xf32, #tpu.memory_space<vmem>>, vector<1x128xf32>
    %21 = vector.broadcast %20 : vector<1x128xf32> to vector<8x128xf32>
    %22 = arith.mulf %21, %17 : vector<8x128xf32>
    %23 = arith.select %19, %17, %22 : vector<8x128xi1>, vector<8x128xf32>
    %24 = arith.truncf %23 : vector<8x128xf32> to vector<8x128xbf16>
    %c0_16 = arith.constant 0 : index
    %c0_17 = arith.constant 0 : index
    %25 = vector.load %arg8[%c0_16, %c0_17] : memref<128x128xbf16, #tpu.memory_space<vmem>>, vector<128x128xbf16>
    %cst_18 = arith.constant dense<0.000000e+00> : vector<8x128xf32>
    %26 = tpu.matmul %24, %25, %cst_18 {dimension_numbers = #tpu.dot_dimension_numbers<[1], [0], [0], [1], [0, 0, 1, 1], [], []>} : vector<8x128xbf16>, vector<128x128xbf16>, vector<8x128xf32> -> vector<8x128xf32>
    %c0_19 = arith.constant 0 : index
    %c0_20 = arith.constant 0 : index
    %27 = vector.load %arg9[%c0_19, %c0_20] : memref<1x128xf32, #tpu.memory_space<vmem>>, vector<1x128xf32>
    %28 = vector.broadcast %27 : vector<1x128xf32> to vector<8x128xf32>
    %29 = arith.addf %26, %28 : vector<8x128xf32>
    %cst_21 = arith.constant dense<0xFF800000> : vector<8xf32>
    %30 = vector.multi_reduction <maximumf>, %29, %cst_21 [1] : vector<8x128xf32> to vector<8xf32>
    %31 = vector.shape_cast %30 : vector<8xf32> to vector<8x1xf32>
    %32 = vector.broadcast %31 : vector<8x1xf32> to vector<8x128xf32>
    %33 = arith.subf %29, %32 : vector<8x128xf32>
    %34 = math.exp %33 : vector<8x128xf32>
    %35 = vector.extract_strided_slice %34 {offsets = [0, 0], sizes = [8, 1], strides = [1, 1]} : vector<8x128xf32> to vector<8x1xf32>
    %c0_22 = arith.constant 0 : index
    %c0_23 = arith.constant 0 : index
    %36 = vector.load %arg1[%c0_22, %c0_23] : memref<8x1024xbf16, #tpu.memory_space<vmem>>, vector<8x128xbf16>
    %37 = arith.extf %36 : vector<8x128xbf16> to vector<8x128xf32>
    %38 = vector.broadcast %35 : vector<8x1xf32> to vector<8x128xf32>
    %39 = arith.mulf %38, %37 : vector<8x128xf32>
    %40 = vector.extract_strided_slice %34 {offsets = [0, 1], sizes = [8, 1], strides = [1, 1]} : vector<8x128xf32> to vector<8x1xf32>
    %c0_24 = arith.constant 0 : index
    %c128 = arith.constant 128 : index
    %41 = vector.load %arg1[%c0_24, %c128] : memref<8x1024xbf16, #tpu.memory_space<vmem>>, vector<8x128xbf16>
    %42 = arith.extf %41 : vector<8x128xbf16> to vector<8x128xf32>
    %43 = vector.broadcast %40 : vector<8x1xf32> to vector<8x128xf32>
    %44 = arith.mulf %43, %42 : vector<8x128xf32>
    %45 = arith.addf %39, %44 : vector<8x128xf32>
    %46 = vector.extract_strided_slice %34 {offsets = [0, 2], sizes = [8, 1], strides = [1, 1]} : vector<8x128xf32> to vector<8x1xf32>
    %c0_25 = arith.constant 0 : index
    %c256 = arith.constant 256 : index
    %47 = vector.load %arg1[%c0_25, %c256] : memref<8x1024xbf16, #tpu.memory_space<vmem>>, vector<8x128xbf16>
    %48 = arith.extf %47 : vector<8x128xbf16> to vector<8x128xf32>
    %49 = vector.broadcast %46 : vector<8x1xf32> to vector<8x128xf32>
    %50 = arith.mulf %49, %48 : vector<8x128xf32>
    %51 = arith.addf %45, %50 : vector<8x128xf32>
    %52 = vector.extract_strided_slice %34 {offsets = [0, 3], sizes = [8, 1], strides = [1, 1]} : vector<8x128xf32> to vector<8x1xf32>
    %c0_26 = arith.constant 0 : index
    %c384 = arith.constant 384 : index
    %53 = vector.load %arg1[%c0_26, %c384] : memref<8x1024xbf16, #tpu.memory_space<vmem>>, vector<8x128xbf16>
    %54 = arith.extf %53 : vector<8x128xbf16> to vector<8x128xf32>
    %55 = vector.broadcast %52 : vector<8x1xf32> to vector<8x128xf32>
    %56 = arith.mulf %55, %54 : vector<8x128xf32>
    %57 = arith.addf %51, %56 : vector<8x128xf32>
    %58 = vector.extract_strided_slice %34 {offsets = [0, 4], sizes = [8, 1], strides = [1, 1]} : vector<8x128xf32> to vector<8x1xf32>
    %c0_27 = arith.constant 0 : index
    %c512 = arith.constant 512 : index
    %59 = vector.load %arg1[%c0_27, %c512] : memref<8x1024xbf16, #tpu.memory_space<vmem>>, vector<8x128xbf16>
    %60 = arith.extf %59 : vector<8x128xbf16> to vector<8x128xf32>
    %61 = vector.broadcast %58 : vector<8x1xf32> to vector<8x128xf32>
    %62 = arith.mulf %61, %60 : vector<8x128xf32>
    %63 = arith.addf %57, %62 : vector<8x128xf32>
    %64 = vector.extract_strided_slice %34 {offsets = [0, 5], sizes = [8, 1], strides = [1, 1]} : vector<8x128xf32> to vector<8x1xf32>
    %c0_28 = arith.constant 0 : index
    %c640 = arith.constant 640 : index
    %65 = vector.load %arg1[%c0_28, %c640] : memref<8x1024xbf16, #tpu.memory_space<vmem>>, vector<8x128xbf16>
    %66 = arith.extf %65 : vector<8x128xbf16> to vector<8x128xf32>
    %67 = vector.broadcast %64 : vector<8x1xf32> to vector<8x128xf32>
    %68 = arith.mulf %67, %66 : vector<8x128xf32>
    %69 = arith.addf %63, %68 : vector<8x128xf32>
    %70 = vector.extract_strided_slice %34 {offsets = [0, 6], sizes = [8, 1], strides = [1, 1]} : vector<8x128xf32> to vector<8x1xf32>
    %c0_29 = arith.constant 0 : index
    %c768 = arith.constant 768 : index
    %71 = vector.load %arg1[%c0_29, %c768] : memref<8x1024xbf16, #tpu.memory_space<vmem>>, vector<8x128xbf16>
    %72 = arith.extf %71 : vector<8x128xbf16> to vector<8x128xf32>
    %73 = vector.broadcast %70 : vector<8x1xf32> to vector<8x128xf32>
    %74 = arith.mulf %73, %72 : vector<8x128xf32>
    %75 = arith.addf %69, %74 : vector<8x128xf32>
    %76 = vector.extract_strided_slice %34 {offsets = [0, 7], sizes = [8, 1], strides = [1, 1]} : vector<8x128xf32> to vector<8x1xf32>
    %c0_30 = arith.constant 0 : index
    %c896 = arith.constant 896 : index
    %77 = vector.load %arg1[%c0_30, %c896] : memref<8x1024xbf16, #tpu.memory_space<vmem>>, vector<8x128xbf16>
    %78 = arith.extf %77 : vector<8x128xbf16> to vector<8x128xf32>
    %79 = vector.broadcast %76 : vector<8x1xf32> to vector<8x128xf32>
    %80 = arith.mulf %79, %78 : vector<8x128xf32>
    %81 = arith.addf %75, %80 : vector<8x128xf32>
    %82 = arith.mulf %81, %81 : vector<8x128xf32>
    %cst_31 = arith.constant dense<0.000000e+00> : vector<8xf32>
    %83 = vector.multi_reduction <add>, %82, %cst_31 [1] : vector<8x128xf32> to vector<8xf32>
    %84 = vector.shape_cast %83 : vector<8xf32> to vector<8x1xf32>
    %cst_32 = arith.constant 1.000000e-24 : f32
    %85 = vector.broadcast %cst_32 : f32 to vector<8x1xf32>
    %86 = arith.maximumf %84, %85 : vector<8x1xf32>
    %87 = math.rsqrt %86 : vector<8x1xf32>
    %cst_33 = arith.constant 2.82842708 : f32
    %88 = vector.broadcast %cst_33 : f32 to vector<8x1xf32>
    %89 = arith.mulf %87, %88 : vector<8x1xf32>
    %90 = vector.broadcast %89 : vector<8x1xf32> to vector<8x128xf32>
    %91 = arith.mulf %81, %90 : vector<8x128xf32>
    %c0_34 = arith.constant 0 : index
    %c0_35 = arith.constant 0 : index
    %92 = vector.load %arg10[%c0_34, %c0_35] : memref<8x128xf32, #tpu.memory_space<vmem>>, vector<8x128xf32>
    tpu.vector_store %arg10[%c0_34, %c0_35], %91 {strides = array<i32>} : memref<8x128xf32, #tpu.memory_space<vmem>>, vector<8x128xf32>,
    return
  }
  func.func @transform_0(%arg0: i32) -> (i32, i32) {
    %c0_i32 = arith.constant 0 : i32
    %c0_i32_0 = arith.constant 0 : i32
    return %arg0, %c0_i32 : i32, i32
  }
  func.func @transform_1(%arg0: i32) -> (i32, i32) {
    %c0_i32 = arith.constant 0 : i32
    %c0_i32_0 = arith.constant 0 : i32
    %c0_i32_1 = arith.constant 0 : i32
    return %c0_i32, %c0_i32_0 : i32, i32
  }
  func.func @transform_2(%arg0: i32) -> (i32, i32) {
    %c0_i32 = arith.constant 0 : i32
    %c0_i32_0 = arith.constant 0 : i32
    %c0_i32_1 = arith.constant 0 : i32
    return %c0_i32, %c0_i32_0 : i32, i32
  }
  func.func @transform_3(%arg0: i32) -> (i32, i32) {
    %c0_i32 = arith.constant 0 : i32
    %c0_i32_0 = arith.constant 0 : i32
    %c0_i32_1 = arith.constant 0 : i32
    return %c0_i32, %c0_i32_0 : i32, i32
  }
  func.func @transform_4(%arg0: i32) -> (i32, i32) {
    %c0_i32 = arith.constant 0 : i32
    %c0_i32_0 = arith.constant 0 : i32
    %c0_i32_1 = arith.constant 0 : i32
    return %c0_i32, %c0_i32_0 : i32, i32
  }
  func.func @transform_5(%arg0: i32) -> (i32, i32) {
    %c0_i32 = arith.constant 0 : i32
    %c0_i32_0 = arith.constant 0 : i32
    %c0_i32_1 = arith.constant 0 : i32
    return %c0_i32, %c0_i32_0 : i32, i32
  }
  func.func @transform_6(%arg0: i32) -> (i32, i32) {
    %c0_i32 = arith.constant 0 : i32
    %c0_i32_0 = arith.constant 0 : i32
    %c0_i32_1 = arith.constant 0 : i32
    return %c0_i32, %c0_i32_0 : i32, i32
  }
  func.func @transform_7(%arg0: i32) -> (i32, i32) {
    %c0_i32 = arith.constant 0 : i32
    %c0_i32_0 = arith.constant 0 : i32
    %c0_i32_1 = arith.constant 0 : i32
    return %c0_i32, %c0_i32_0 : i32, i32
  }
  func.func @transform_8(%arg0: i32) -> (i32, i32) {
    %c0_i32 = arith.constant 0 : i32
    %c0_i32_0 = arith.constant 0 : i32
    %c0_i32_1 = arith.constant 0 : i32
    return %c0_i32, %c0_i32_0 : i32, i32
  }
  func.func @transform_9(%arg0: i32) -> (i32, i32) {
    %c0_i32 = arith.constant 0 : i32
    %c0_i32_0 = arith.constant 0 : i32
    return %arg0, %c0_i32 : i32, i32
  }
}

</mosaic_0001>

<llo_original>
// kernel: tpu_custom_call.1
$region0: #{tpu_custom_call.1}
  #allocation0 [shape = 'u32[]', space=smem, size = 0x4, offset = 0x4, fixed_abs, tag = 'smem constant byte address 0x4 - core index']
  #allocation1 [shape = 'u32[144,128]{1,0:T(1,128)}', space=vmem, size = 0x12000, scoped, tag = 'internal scratch']
  %s0 = inlined_call_operand.hbm [shape: bf16[16,1024], index: 0, kind: input, shape index: {}]
  %s1 = inlined_call_operand.hbm [shape: bf16[1024,128], index: 1, kind: input, shape index: {}]
  %s2 = inlined_call_operand.hbm [shape: f32[1,128], index: 2, kind: input, shape index: {}]
  %s3 = inlined_call_operand.hbm [shape: f32[1,128], index: 3, kind: input, shape index: {}]
  %s4 = inlined_call_operand.hbm [shape: bf16[128,128], index: 4, kind: input, shape index: {}]
  %s5 = inlined_call_operand.hbm [shape: f32[1,128], index: 5, kind: input, shape index: {}]
  %s6 = inlined_call_operand.hbm [shape: f32[1,128], index: 6, kind: input, shape index: {}]
  %s7 = inlined_call_operand.hbm [shape: bf16[128,128], index: 7, kind: input, shape index: {}]
  %s8 = inlined_call_operand.hbm [shape: f32[1,128], index: 8, kind: input, shape index: {}]
  %s9 = inlined_call_operand.hbm [shape: f32[16,128], index: 9, kind: output, shape index: {}]
  %s10 = sld [smem:[#allocation0]]
  $region105: #{tpu_custom_call.1} parent=0
    _
  %s12 = ssub.s32 1, %s10
  %s13 = scalar_select 0, %s12, %s10
  $region1: #{tpu_custom_call.1} parent=0
    #allocation2 [shape = 'u8[32768]{0}', space=vmem, size = 0x8000, scoped, tag = 'input window, operand 0']
    #allocation3 [shape = 's32[2]{0}', space=sflag, size = 0x8, scoped, tag = 'scoped memory for tpu_custom_call.1']
    #allocation4 [shape = 's32[2]{0}', space=sflag, size = 0x8, scoped, tag = 'scoped memory for tpu_custom_call.1']
    #allocation5 [shape = 'u8[262144]{0}', space=vmem, size = 0x40000, scoped, tag = 'input window, operand 1, single buffered']
    #allocation6 [shape = 's32[1]{0}', space=sflag, size = 0x4, scoped, tag = 'scoped memory for tpu_custom_call.1']
    #allocation7 [shape = 'u8[512]{0}', space=vmem, size = 0x400, scoped, tag = 'input window, operand 2, single buffered']
    #allocation8 [shape = 'u8[512]{0}', space=vmem, size = 0x400, scoped, tag = 'input window, operand 3, single buffered']
    #allocation9 [shape = 's32[1]{0}', space=sflag, size = 0x4, scoped, tag = 'scoped memory for tpu_custom_call.1']
    #allocation10 [shape = 'u8[32768]{0}', space=vmem, size = 0x8000, scoped, tag = 'input window, operand 4, single buffered']
    #allocation11 [shape = 'u8[512]{0}', space=vmem, size = 0x400, scoped, tag = 'input window, operand 5, single buffered']
    #allocation12 [shape = 's32[1]{0}', space=sflag, size = 0x4, scoped, tag = 'scoped memory for tpu_custom_call.1']
    #allocation13 [shape = 'u8[512]{0}', space=vmem, size = 0x400, scoped, tag = 'input window, operand 6, single buffered']
    #allocation14 [shape = 'u8[32768]{0}', space=vmem, size = 0x8000, scoped, tag = 'input window, operand 7, single buffered']
    #allocation15 [shape = 's32[1]{0}', space=sflag, size = 0x4, scoped, tag = 'scoped memory for tpu_custom_call.1']
    #allocation16 [shape = 'u8[512]{0}', space=vmem, size = 0x400, scoped, tag = 'input window, operand 8, single buffered']
    #allocation17 [shape = 'u8[8192]{0}', space=vmem, size = 0x2000, scoped, tag = 'output window, operand 0']
    %14 = vsyncpa [#allocation3], 0
    %s15 = scalar_lea.sflag [#allocation3], 1
    %16 = vsyncpa %s15, 0
    %17 = vsyncpa [#allocation6], 0
    %18 = vsyncpa [#allocation9], 0
    %19 = vsyncpa [#allocation12], 0
    %20 = vsyncpa [#allocation15], 0
    %21 = vsyncpa [#allocation4], 0
    %s22 = scalar_lea.sflag [#allocation4], 1
    %23 = vsyncpa %s22, 0
    loop: start=0, step=1, limit=4
    $region2: #{tpu_custom_call.1} parent=1 // loop_pre_header
      _
    $region3: #{tpu_custom_call.1} parent=1 // loop_header
      %s25 = sphi 0, %s29
      %p26 = scmp.ge.s32.totalorder %s25, 4
      %s35 = sphi 0, %s37
      %s38 = sphi 0, %s35
      %s39 = sphi 0, %s38
      %s55 = sphi 0, %s39
      %s59 = sphi 0, %s59
      %s61 = sphi 0, %s59
      %s62 = sphi 0, %s61
      %s76 = sphi 0, %s62
      %s80 = sphi 0, %s80
      %s82 = sphi 0, %s80
      %s83 = sphi 0, %s82
      %s97 = sphi 0, %s83
      %s101 = sphi 0, %s101
      %s103 = sphi 0, %s101
      %s104 = sphi 0, %s103
      %s118 = sphi 0, %s104
      %s122 = sphi 0, %s122
      %s124 = sphi 0, %s122
      %s125 = sphi 0, %s124
      %s139 = sphi 0, %s125
      %s143 = sphi 0, %s143
      %s145 = sphi 0, %s143
      %s146 = sphi 0, %s145
      %s160 = sphi 0, %s146
      %s164 = sphi 0, %s164
      %s166 = sphi 0, %s164
      %s167 = sphi 0, %s166
      %s181 = sphi 0, %s167
      %s185 = sphi 0, %s185
      %s187 = sphi 0, %s185
      %s188 = sphi 0, %s187
      %s202 = sphi 0, %s188
      %s206 = sphi 0, %s206
      %s208 = sphi 0, %s206
      %s209 = sphi 0, %s208
      %s223 = sphi 0, %s209
      %s229 = sphi 0, %s231
      %s232 = sphi 0, %s229
      %s233 = sphi 0, %s232
      %s249 = sphi 0, %s233
    $region4: #{tpu_custom_call.1} parent=1 // loop_header_branch
      %28 = sbr.rel (%p26) target = $region8
    $region5: #{tpu_custom_call.1} parent=1 // loop_body
      %s30 = ssub.s32 %s25, 1
      %s31 = ssub.s32 %s25, 2
      %s32 = sadd.s32 %s25, 1
      %s33 = ssub.s32 %s25, %s32
      %p34 = scmp.eq.s32.totalorder %s33, 0
      %s36 = sadd.s32 %s35, 1
      %s37 = scalar_select %p34, %s35, %s36
      %p40 = pneg %p34
      %p41 = scmp.eq.s32.totalorder %s25, 1
      %p42 = por %p40, %p41
      %p43 = scmp.ne.s32.totalorder %s35, %s38
      %p44 = scmp.eq.s32.totalorder %s25, 0
      %p45 = por %p43, %p44
      %p46 = scmp.ne.s32.totalorder %s35, %s38
      %p47 = scmp.eq.s32.totalorder %s30, 1
      %p48 = por %p46, %p47
      %p49 = scmp.ne.s32.totalorder %s38, %s39
      %p50 = scmp.eq.s32.totalorder %s30, 0
      %p51 = por %p49, %p50
      %p52 = scmp.ne.s32.totalorder %s38, %s39
      %p53 = scmp.eq.s32.totalorder %s31, 1
      %p54 = por %p52, %p53
      %p56 = scmp.ne.s32.totalorder %s39, %s55
      %p57 = scmp.eq.s32.totalorder %s31, 0
      %p58 = por %p56, %p57
      %s60 = sadd.s32 %s59, 1
      %p63 = scmp.eq.s32.totalorder %s25, 1
      %p64 = scmp.ne.s32.totalorder %s59, %s61
      %p65 = scmp.eq.s32.totalorder %s25, 0
      %p66 = por %p64, %p65
      %p67 = scmp.ne.s32.totalorder %s59, %s61
      %p68 = scmp.eq.s32.totalorder %s30, 1
      %p69 = por %p67, %p68
      %p70 = scmp.ne.s32.totalorder %s61, %s62
      %p71 = scmp.eq.s32.totalorder %s30, 0
      %p72 = por %p70, %p71
      %p73 = scmp.ne.s32.totalorder %s61, %s62
      %p74 = scmp.eq.s32.totalorder %s31, 1
      %p75 = por %p73, %p74
      %p77 = scmp.ne.s32.totalorder %s62, %s76
      %p78 = scmp.eq.s32.totalorder %s31, 0
      %p79 = por %p77, %p78
      %s81 = sadd.s32 %s80, 1
      %p84 = scmp.eq.s32.totalorder %s25, 1
      %p85 = scmp.ne.s32.totalorder %s80, %s82
      %p86 = scmp.eq.s32.totalorder %s25, 0
      %p87 = por %p85, %p86
      %p88 = scmp.ne.s32.totalorder %s80, %s82
      %p89 = scmp.eq.s32.totalorder %s30, 1
      %p90 = por %p88, %p89
      %p91 = scmp.ne.s32.totalorder %s82, %s83
      %p92 = scmp.eq.s32.totalorder %s30, 0
      %p93 = por %p91, %p92
      %p94 = scmp.ne.s32.totalorder %s82, %s83
      %p95 = scmp.eq.s32.totalorder %s31, 1
      %p96 = por %p94, %p95
      %p98 = scmp.ne.s32.totalorder %s83, %s97
      %p99 = scmp.eq.s32.totalorder %s31, 0
      %p100 = por %p98, %p99
      %s102 = sadd.s32 %s101, 1
      %p105 = scmp.eq.s32.totalorder %s25, 1
      %p106 = scmp.ne.s32.totalorder %s101, %s103
      %p107 = scmp.eq.s32.totalorder %s25, 0
      %p108 = por %p106, %p107
      %p109 = scmp.ne.s32.totalorder %s101, %s103
      %p110 = scmp.eq.s32.totalorder %s30, 1
      %p111 = por %p109, %p110
      %p112 = scmp.ne.s32.totalorder %s103, %s104
      %p113 = scmp.eq.s32.totalorder %s30, 0
      %p114 = por %p112, %p113
      %p115 = scmp.ne.s32.totalorder %s103, %s104
      %p116 = scmp.eq.s32.totalorder %s31, 1
      %p117 = por %p115, %p116
      %p119 = scmp.ne.s32.totalorder %s104, %s118
      %p120 = scmp.eq.s32.totalorder %s31, 0
      %p121 = por %p119, %p120
      %s123 = sadd.s32 %s122, 1
      %p126 = scmp.eq.s32.totalorder %s25, 1
      %p127 = scmp.ne.s32.totalorder %s122, %s124
      %p128 = scmp.eq.s32.totalorder %s25, 0
      %p129 = por %p127, %p128
      %p130 = scmp.ne.s32.totalorder %s122, %s124
      %p131 = scmp.eq.s32.totalorder %s30, 1
      %p132 = por %p130, %p131
      %p133 = scmp.ne.s32.totalorder %s124, %s125
      %p134 = scmp.eq.s32.totalorder %s30, 0
      %p135 = por %p133, %p134
      %p136 = scmp.ne.s32.totalorder %s124, %s125
      %p137 = scmp.eq.s32.totalorder %s31, 1
      %p138 = por %p136, %p137
      %p140 = scmp.ne.s32.totalorder %s125, %s139
      %p141 = scmp.eq.s32.totalorder %s31, 0
      %p142 = por %p140, %p141
      %s144 = sadd.s32 %s143, 1
      %p147 = scmp.eq.s32.totalorder %s25, 1
      %p148 = scmp.ne.s32.totalorder %s143, %s145
      %p149 = scmp.eq.s32.totalorder %s25, 0
      %p150 = por %p148, %p149
      %p151 = scmp.ne.s32.totalorder %s143, %s145
      %p152 = scmp.eq.s32.totalorder %s30, 1
      %p153 = por %p151, %p152
      %p154 = scmp.ne.s32.totalorder %s145, %s146
      %p155 = scmp.eq.s32.totalorder %s30, 0
      %p156 = por %p154, %p155
      %p157 = scmp.ne.s32.totalorder %s145, %s146
      %p158 = scmp.eq.s32.totalorder %s31, 1
      %p159 = por %p157, %p158
      %p161 = scmp.ne.s32.totalorder %s146, %s160
      %p162 = scmp.eq.s32.totalorder %s31, 0
      %p163 = por %p161, %p162
      %s165 = sadd.s32 %s164, 1
      %p168 = scmp.eq.s32.totalorder %s25, 1
      %p169 = scmp.ne.s32.totalorder %s164, %s166
      %p170 = scmp.eq.s32.totalorder %s25, 0
      %p171 = por %p169, %p170
      %p172 = scmp.ne.s32.totalorder %s164, %s166
      %p173 = scmp.eq.s32.totalorder %s30, 1
      %p174 = por %p172, %p173
      %p175 = scmp.ne.s32.totalorder %s166, %s167
      %p176 = scmp.eq.s32.totalorder %s30, 0
      %p177 = por %p175, %p176
      %p178 = scmp.ne.s32.totalorder %s166, %s167
      %p179 = scmp.eq.s32.totalorder %s31, 1
      %p180 = por %p178, %p179
      %p182 = scmp.ne.s32.totalorder %s167, %s181
      %p183 = scmp.eq.s32.totalorder %s31, 0
      %p184 = por %p182, %p183
      %s186 = sadd.s32 %s185, 1
      %p189 = scmp.eq.s32.totalorder %s25, 1
      %p190 = scmp.ne.s32.totalorder %s185, %s187
      %p191 = scmp.eq.s32.totalorder %s25, 0
      %p192 = por %p190, %p191
      %p193 = scmp.ne.s32.totalorder %s185, %s187
      %p194 = scmp.eq.s32.totalorder %s30, 1
      %p195 = por %p193, %p194
      %p196 = scmp.ne.s32.totalorder %s187, %s188
      %p197 = scmp.eq.s32.totalorder %s30, 0
      %p198 = por %p196, %p197
      %p199 = scmp.ne.s32.totalorder %s187, %s188
      %p200 = scmp.eq.s32.totalorder %s31, 1
      %p201 = por %p199, %p200
      %p203 = scmp.ne.s32.totalorder %s188, %s202
      %p204 = scmp.eq.s32.totalorder %s31, 0
      %p205 = por %p203, %p204
      %s207 = sadd.s32 %s206, 1
      %p210 = scmp.eq.s32.totalorder %s25, 1
      %p211 = scmp.ne.s32.totalorder %s206, %s208
      %p212 = scmp.eq.s32.totalorder %s25, 0
      %p213 = por %p211, %p212
      %p214 = scmp.ne.s32.totalorder %s206, %s208
      %p215 = scmp.eq.s32.totalorder %s30, 1
      %p216 = por %p214, %p215
      %p217 = scmp.ne.s32.totalorder %s208, %s209
      %p218 = scmp.eq.s32.totalorder %s30, 0
      %p219 = por %p217, %p218
      %p220 = scmp.ne.s32.totalorder %s208, %s209
      %p221 = scmp.eq.s32.totalorder %s31, 1
      %p222 = por %p220, %p221
      %p224 = scmp.ne.s32.totalorder %s209, %s223
      %p225 = scmp.eq.s32.totalorder %s31, 0
      %p226 = por %p224, %p225
      %s227 = ssub.s32 %s25, %s32
      %p228 = scmp.eq.s32.totalorder %s227, 0
      %s230 = sadd.s32 %s229, 1
      %s231 = scalar_select %p228, %s229, %s230
      %p234 = pneg %p228
      %p235 = scmp.eq.s32.totalorder %s25, 1
      %p236 = por %p234, %p235
      %p237 = scmp.ne.s32.totalorder %s229, %s232
      %p238 = scmp.eq.s32.totalorder %s25, 0
      %p239 = por %p237, %p238
      %p240 = scmp.ne.s32.totalorder %s229, %s232
      %p241 = scmp.eq.s32.totalorder %s30, 1
      %p242 = por %p240, %p241
      %p243 = scmp.ne.s32.totalorder %s232, %s233
      %p244 = scmp.eq.s32.totalorder %s30, 0
      %p245 = por %p243, %p244
      %p246 = scmp.ne.s32.totalorder %s232, %s233
      %p247 = scmp.eq.s32.totalorder %s31, 1
      %p248 = por %p246, %p247
      %p250 = scmp.ne.s32.totalorder %s233, %s249
      %p251 = scmp.eq.s32.totalorder %s31, 0
      %p252 = por %p250, %p251
      %p253 = scmp.le.s32.totalorder 1, %s25
      %p254 = scmp.lt.s32.totalorder %s25, 3
      %p255 = pnand %p253, %p254
      %p256 = pneg %p255
      // Predicated region
      $region9: #{tpu_custom_call.1} parent=5 // pred_check
        _
      $region10: #{tpu_custom_call.1} parent=5 // pred_check_branch
        %258 = sbr.rel (%p255) target = $region12
      $region11: #{tpu_custom_call.1} parent=5 // pred_region
        %s259 = ssub.s32 %s25, 1
        // Predicated region
        $region13: #{tpu_custom_call.1} parent=11 // pred_check
          %p260 = pneg %p72
        $region14: #{tpu_custom_call.1} parent=11 // pred_check_branch
          %262 = sbr.rel (%p260) target = $region16
        $region15: #{tpu_custom_call.1} parent=11 // pred_region
          %s264 = ssub.s32 8192, 8192
          %265 = vsyncadd [#allocation6], %s264
          %s266 = sshll.u32 [#allocation5], 4
          %s267 = int_to_ptr.vmem [resolvable:$true] %s266
          %272 = dma.hbm_to_vmem [thread:$0]  %s1, 8192, %s267, [#allocation6], 64, 64, 4
        $region16: #{tpu_custom_call.1} parent=11 // pred_fallthru
          _
        // Predicated region
        $region17: #{tpu_custom_call.1} parent=11 // pred_check
          %p273 = pneg %p93
        $region18: #{tpu_custom_call.1} parent=11 // pred_check_branch
          %275 = sbr.rel (%p273) target = $region20
        $region19: #{tpu_custom_call.1} parent=11 // pred_region
          %s277 = ssub.s32 16, 16
          %278 = vsyncadd [#allocation6], %s277
          %s280 = sshll.u32 [#allocation7], 4
          %s281 = int_to_ptr.vmem [resolvable:$true] %s280
          %283 = dma.hbm_to_vmem [thread:$0]  %s2, 16, %s281, [#allocation6]
        $region20: #{tpu_custom_call.1} parent=11 // pred_fallthru
          _
        // Predicated region
        $region21: #{tpu_custom_call.1} parent=11 // pred_check
          %p284 = pneg %p114
        $region22: #{tpu_custom_call.1} parent=11 // pred_check_branch
          %286 = sbr.rel (%p284) target = $region24
        $region23: #{tpu_custom_call.1} parent=11 // pred_region
          %s288 = ssub.s32 16, 16
          %289 = vsyncadd [#allocation9], %s288
          %s291 = sshll.u32 [#allocation8], 4
          %s292 = int_to_ptr.vmem [resolvable:$true] %s291
          %294 = dma.hbm_to_vmem [thread:$0]  %s3, 16, %s292, [#allocation9]
        $region24: #{tpu_custom_call.1} parent=11 // pred_fallthru
          _
        // Predicated region
        $region25: #{tpu_custom_call.1} parent=11 // pred_check
          %p295 = pneg %p135
        $region26: #{tpu_custom_call.1} parent=11 // pred_check_branch
          %297 = sbr.rel (%p295) target = $region28
        $region27: #{tpu_custom_call.1} parent=11 // pred_region
          %s299 = ssub.s32 1024, 1024
          %300 = vsyncadd [#allocation9], %s299
          %s301 = sshll.u32 [#allocation10], 4
          %s302 = int_to_ptr.vmem [resolvable:$true] %s301
          %307 = dma.hbm_to_vmem [thread:$0]  %s4, 1024, %s302, [#allocation9], 64, 64, 4
        $region28: #{tpu_custom_call.1} parent=11 // pred_fallthru
          _
        // Predicated region
        $region29: #{tpu_custom_call.1} parent=11 // pred_check
          %p308 = pneg %p156
        $region30: #{tpu_custom_call.1} parent=11 // pred_check_branch
          %310 = sbr.rel (%p308) target = $region32
        $region31: #{tpu_custom_call.1} parent=11 // pred_region
          %s312 = ssub.s32 16, 16
          %313 = vsyncadd [#allocation12], %s312
          %s315 = sshll.u32 [#allocation11], 4
          %s316 = int_to_ptr.vmem [resolvable:$true] %s315
          %318 = dma.hbm_to_vmem [thread:$0]  %s5, 16, %s316, [#allocation12]
        $region32: #{tpu_custom_call.1} parent=11 // pred_fallthru
          _
        // Predicated region
        $region33: #{tpu_custom_call.1} parent=11 // pred_check
          %p319 = pneg %p177
        $region34: #{tpu_custom_call.1} parent=11 // pred_check_branch
          %321 = sbr.rel (%p319) target = $region36
        $region35: #{tpu_custom_call.1} parent=11 // pred_region
          %s323 = ssub.s32 16, 16
          %324 = vsyncadd [#allocation12], %s323
          %s326 = sshll.u32 [#allocation13], 4
          %s327 = int_to_ptr.vmem [resolvable:$true] %s326
          %329 = dma.hbm_to_vmem [thread:$0]  %s6, 16, %s327, [#allocation12]
        $region36: #{tpu_custom_call.1} parent=11 // pred_fallthru
          _
        // Predicated region
        $region37: #{tpu_custom_call.1} parent=11 // pred_check
          %p330 = pneg %p198
        $region38: #{tpu_custom_call.1} parent=11 // pred_check_branch
          %332 = sbr.rel (%p330) target = $region40
        $region39: #{tpu_custom_call.1} parent=11 // pred_region
          %s334 = ssub.s32 1024, 1024
          %335 = vsyncadd [#allocation15], %s334
          %s336 = sshll.u32 [#allocation14], 4
          %s337 = int_to_ptr.vmem [resolvable:$true] %s336
          %342 = dma.hbm_to_vmem [thread:$0]  %s7, 1024, %s337, [#allocation15], 64, 64, 4
        $region40: #{tpu_custom_call.1} parent=11 // pred_fallthru
          _
        // Predicated region
        $region41: #{tpu_custom_call.1} parent=11 // pred_check
          %p343 = pneg %p219
        $region42: #{tpu_custom_call.1} parent=11 // pred_check_branch
          %345 = sbr.rel (%p343) target = $region44
        $region43: #{tpu_custom_call.1} parent=11 // pred_region
          %s347 = ssub.s32 16, 16
          %348 = vsyncadd [#allocation15], %s347
          %s350 = sshll.u32 [#allocation16], 4
          %s351 = int_to_ptr.vmem [resolvable:$true] %s350
          %353 = dma.hbm_to_vmem [thread:$0]  %s8, 16, %s351, [#allocation15]
        $region44: #{tpu_custom_call.1} parent=11 // pred_fallthru
          _
      $region12: #{tpu_custom_call.1} parent=5 // pred_fallthru
        _
      %p354 = scmp.lt.s32.totalorder %s25, 2
      // Predicated region
      $region45: #{tpu_custom_call.1} parent=5 // pred_check
        %p355 = pneg %p354
      $region46: #{tpu_custom_call.1} parent=5 // pred_check_branch
        %357 = sbr.rel (%p355) target = $region48
      $region47: #{tpu_custom_call.1} parent=5 // pred_region
        // Predicated region
        $region49: #{tpu_custom_call.1} parent=47 // pred_check
          %p358 = pneg %p45
        $region50: #{tpu_custom_call.1} parent=47 // pred_check_branch
          %360 = sbr.rel (%p358) target = $region52
        $region51: #{tpu_custom_call.1} parent=47 // pred_region
          %s361 = sand.u32 %s35, 1
          %s362 = scalar_lea.sflag [#allocation3], %s361
          %s363 = sand.u32 %s35, 1
          %s364 = smul.addr %s363, 32
          %s365 = scalar_lea.vmem [#allocation2], %s364
          %s367 = ssub.s32 512, 512
          %368 = vsyncadd %s362, %s367
          %s369 = smul.addr %s25, 8
          %s370 = smul.addr %s369, 64
          %s371 = scalar_lea.hbm %s0, %s370
          %s373 = sshll.u32 %s365, 4
          %s374 = int_to_ptr.vmem [resolvable:$true] %s373
          %376 = dma.hbm_to_vmem [thread:$0]  %s371, 512, %s374, %s362
        $region52: #{tpu_custom_call.1} parent=47 // pred_fallthru
          _
      $region48: #{tpu_custom_call.1} parent=5 // pred_fallthru
        _
      %p377 = scmp.le.s32.totalorder 1, %s25
      %p378 = scmp.lt.s32.totalorder %s25, 3
      %p379 = pnand %p377, %p378
      %p380 = pneg %p379
      // Predicated region
      $region53: #{tpu_custom_call.1} parent=5 // pred_check
        _
      $region54: #{tpu_custom_call.1} parent=5 // pred_check_branch
        %382 = sbr.rel (%p379) target = $region56
      $region55: #{tpu_custom_call.1} parent=5 // pred_region
        %s383 = ssub.s32 %s25, 1
        %s384 = sand.u32 %s38, 1
        %s385 = scalar_lea.sflag [#allocation3], %s384
        %s386 = sand.u32 %s38, 1
        %s387 = smul.addr %s386, 32
        %s388 = scalar_lea.vmem [#allocation2], %s387
        // Predicated region
        $region57: #{tpu_custom_call.1} parent=55 // pred_check
          %p389 = pneg %p51
        $region58: #{tpu_custom_call.1} parent=55 // pred_check_branch
          %391 = sbr.rel (%p389) target = $region60
        $region59: #{tpu_custom_call.1} parent=55 // pred_region
          %392 = dma.done %s385, 512
        $region60: #{tpu_custom_call.1} parent=55 // pred_fallthru
          _
        // Predicated region
        $region61: #{tpu_custom_call.1} parent=55 // pred_check
          %p393 = pneg %p72
        $region62: #{tpu_custom_call.1} parent=55 // pred_check_branch
          %395 = sbr.rel (%p393) target = $region64
        $region63: #{tpu_custom_call.1} parent=55 // pred_region
          %396 = dma.done [#allocation6], 8192
        $region64: #{tpu_custom_call.1} parent=55 // pred_fallthru
          _
        // Predicated region
        $region65: #{tpu_custom_call.1} parent=55 // pred_check
          %p397 = pneg %p93
        $region66: #{tpu_custom_call.1} parent=55 // pred_check_branch
          %399 = sbr.rel (%p397) target = $region68
        $region67: #{tpu_custom_call.1} parent=55 // pred_region
          %400 = dma.done [#allocation6], 16
        $region68: #{tpu_custom_call.1} parent=55 // pred_fallthru
          _
        // Predicated region
        $region69: #{tpu_custom_call.1} parent=55 // pred_check
          %p401 = pneg %p114
        $region70: #{tpu_custom_call.1} parent=55 // pred_check_branch
          %403 = sbr.rel (%p401) target = $region72
        $region71: #{tpu_custom_call.1} parent=55 // pred_region
          %404 = dma.done [#allocation9], 16
        $region72: #{tpu_custom_call.1} parent=55 // pred_fallthru
          _
        // Predicated region
        $region73: #{tpu_custom_call.1} parent=55 // pred_check
          %p405 = pneg %p135
        $region74: #{tpu_custom_call.1} parent=55 // pred_check_branch
          %407 = sbr.rel (%p405) target = $region76
        $region75: #{tpu_custom_call.1} parent=55 // pred_region
          %408 = dma.done [#allocation9], 1024
        $region76: #{tpu_custom_call.1} parent=55 // pred_fallthru
          _
        // Predicated region
        $region77: #{tpu_custom_call.1} parent=55 // pred_check
          %p409 = pneg %p156
        $region78: #{tpu_custom_call.1} parent=55 // pred_check_branch
          %411 = sbr.rel (%p409) target = $region80
        $region79: #{tpu_custom_call.1} parent=55 // pred_region
          %412 = dma.done [#allocation12], 16
        $region80: #{tpu_custom_call.1} parent=55 // pred_fallthru
          _
        // Predicated region
        $region81: #{tpu_custom_call.1} parent=55 // pred_check
          %p413 = pneg %p177
        $region82: #{tpu_custom_call.1} parent=55 // pred_check_branch
          %415 = sbr.rel (%p413) target = $region84
        $region83: #{tpu_custom_call.1} parent=55 // pred_region
          %416 = dma.done [#allocation12], 16
        $region84: #{tpu_custom_call.1} parent=55 // pred_fallthru
          _
        // Predicated region
        $region85: #{tpu_custom_call.1} parent=55 // pred_check
          %p417 = pneg %p198
        $region86: #{tpu_custom_call.1} parent=55 // pred_check_branch
          %419 = sbr.rel (%p417) target = $region88
        $region87: #{tpu_custom_call.1} parent=55 // pred_region
          %420 = dma.done [#allocation15], 1024
        $region88: #{tpu_custom_call.1} parent=55 // pred_fallthru
          _
        // Predicated region
        $region89: #{tpu_custom_call.1} parent=55 // pred_check
          %p421 = pneg %p219
        $region90: #{tpu_custom_call.1} parent=55 // pred_check_branch
          %423 = sbr.rel (%p421) target = $region92
        $region91: #{tpu_custom_call.1} parent=55 // pred_region
          %424 = dma.done [#allocation15], 16
        $region92: #{tpu_custom_call.1} parent=55 // pred_fallthru
          _
        %s425 = sand.u32 %s38, 1
        %s426 = scalar_lea.sflag [#allocation3], %s425
        %s427 = sand.u32 %s38, 1
        %s428 = smul.addr %s427, 32
        %s429 = scalar_lea.vmem [#allocation2], %s428
        %p430 = pneg %p51
        %p431 = pneg %p48
        %p432 = pneg %p72
        %p433 = pneg %p69
        %p434 = pneg %p93
        %p435 = pneg %p90
        %p436 = pneg %p114
        %p437 = pneg %p111
        %p438 = pneg %p135
        %p439 = pneg %p132
        %p440 = pneg %p156
        %p441 = pneg %p153
        %p442 = pneg %p177
        %p443 = pneg %p174
        %p444 = pneg %p198
        %p445 = pneg %p195
        %p446 = pneg %p219
        %p447 = pneg %p216
        %p448 = pneg %p245
        %p449 = pneg %p242
        %s450 = sand.u32 %s232, 1
        %s451 = scalar_lea.sflag [#allocation4], %s450
        %s452 = sand.u32 %s232, 1
        %s453 = smul.addr %s452, 8
        %s454 = scalar_lea.vmem [#allocation17], %s453
        %v456 = vld [vmem:[%s388] sm:$0xff]
        %v457 = vld [vmem:[%s388 + $0x8] sm:$0xff]
        %v458 = vld [vmem:[%s388 + $0x10] sm:$0xff]
        %v459 = vld [vmem:[%s388 + $0x18] sm:$0xff]
        %v460 = vld [vmem:[#allocation5] sm:$0xf]
        %v461 = vld [vmem:[#allocation5 + $0x4] sm:$0xf]
        %v462 = vld [vmem:[#allocation5 + $0x8] sm:$0xf]
        %v463 = vld [vmem:[#allocation5 + $0xc] sm:$0xf]
        %v464 = vld [vmem:[#allocation5 + $0x10] sm:$0xf]
        %v465 = vld [vmem:[#allocation5 + $0x14] sm:$0xf]
        %v466 = vld [vmem:[#allocation5 + $0x18] sm:$0xf]
        %v467 = vld [vmem:[#allocation5 + $0x1c] sm:$0xf]
        %v468 = vld [vmem:[#allocation5 + $0x20] sm:$0xf]
        %v469 = vld [vmem:[#allocation5 + $0x24] sm:$0xf]
        %v470 = vld [vmem:[#allocation5 + $0x28] sm:$0xf]
        %v471 = vld [vmem:[#allocation5 + $0x2c] sm:$0xf]
        %v472 = vld [vmem:[#allocation5 + $0x30] sm:$0xf]
        %v473 = vld [vmem:[#allocation5 + $0x34] sm:$0xf]
        %v474 = vld [vmem:[#allocation5 + $0x38] sm:$0xf]
        %v475 = vld [vmem:[#allocation5 + $0x3c] sm:$0xf]
        %v476 = vld [vmem:[#allocation5 + $0x40] sm:$0xf]
        %v477 = vld [vmem:[#allocation5 + $0x44] sm:$0xf]
        %v478 = vld [vmem:[#allocation5 + $0x48] sm:$0xf]
        %v479 = vld [vmem:[#allocation5 + $0x4c] sm:$0xf]
        %v480 = vld [vmem:[#allocation5 + $0x50] sm:$0xf]
        %v481 = vld [vmem:[#allocation5 + $0x54] sm:$0xf]
        %v482 = vld [vmem:[#allocation5 + $0x58] sm:$0xf]
        %v483 = vld [vmem:[#allocation5 + $0x5c] sm:$0xf]
        %v484 = vld [vmem:[#allocation5 + $0x60] sm:$0xf]
        %v485 = vld [vmem:[#allocation5 + $0x64] sm:$0xf]
        %v486 = vld [vmem:[#allocation5 + $0x68] sm:$0xf]
        %v487 = vld [vmem:[#allocation5 + $0x6c] sm:$0xf]
        %v488 = vld [vmem:[#allocation5 + $0x70] sm:$0xf]
        %v489 = vld [vmem:[#allocation5 + $0x74] sm:$0xf]
        %v490 = vld [vmem:[#allocation5 + $0x78] sm:$0xf]
        %v491 = vld [vmem:[#allocation5 + $0x7c] sm:$0xf]
        %v492 = vld [vmem:[#allocation5 + $0x80] sm:$0xf]
        %v493 = vld [vmem:[#allocation5 + $0x84] sm:$0xf]
        %v494 = vld [vmem:[#allocation5 + $0x88] sm:$0xf]
        %v495 = vld [vmem:[#allocation5 + $0x8c] sm:$0xf]
        %v496 = vld [vmem:[#allocation5 + $0x90] sm:$0xf]
        %v497 = vld [vmem:[#allocation5 + $0x94] sm:$0xf]
        %v498 = vld [vmem:[#allocation5 + $0x98] sm:$0xf]
        %v499 = vld [vmem:[#allocation5 + $0x9c] sm:$0xf]
        %v500 = vld [vmem:[#allocation5 + $0xa0] sm:$0xf]
        %v501 = vld [vmem:[#allocation5 + $0xa4] sm:$0xf]
        %v502 = vld [vmem:[#allocation5 + $0xa8] sm:$0xf]
        %v503 = vld [vmem:[#allocation5 + $0xac] sm:$0xf]
        %v504 = vld [vmem:[#allocation5 + $0xb0] sm:$0xf]
        %v505 = vld [vmem:[#allocation5 + $0xb4] sm:$0xf]
        %v506 = vld [vmem:[#allocation5 + $0xb8] sm:$0xf]
        %v507 = vld [vmem:[#allocation5 + $0xbc] sm:$0xf]
        %v508 = vld [vmem:[#allocation5 + $0xc0] sm:$0xf]
        %v509 = vld [vmem:[#allocation5 + $0xc4] sm:$0xf]
        %v510 = vld [vmem:[#allocation5 + $0xc8] sm:$0xf]
        %v511 = vld [vmem:[#allocation5 + $0xcc] sm:$0xf]
        %v512 = vld [vmem:[#allocation5 + $0xd0] sm:$0xf]
        %v513 = vld [vmem:[#allocation5 + $0xd4] sm:$0xf]
        %v514 = vld [vmem:[#allocation5 + $0xd8] sm:$0xf]
        %v515 = vld [vmem:[#allocation5 + $0xdc] sm:$0xf]
        %v516 = vld [vmem:[#allocation5 + $0xe0] sm:$0xf]
        %v517 = vld [vmem:[#allocation5 + $0xe4] sm:$0xf]
        %v518 = vld [vmem:[#allocation5 + $0xe8] sm:$0xf]
        %v519 = vld [vmem:[#allocation5 + $0xec] sm:$0xf]
        %v520 = vld [vmem:[#allocation5 + $0xf0] sm:$0xf]
        %v521 = vld [vmem:[#allocation5 + $0xf4] sm:$0xf]
        %v522 = vld [vmem:[#allocation5 + $0xf8] sm:$0xf]
        %v523 = vld [vmem:[#allocation5 + $0xfc] sm:$0xf]
        %v524 = vld [vmem:[#allocation5 + $0x100] sm:$0xf]
        %v525 = vld [vmem:[#allocation5 + $0x104] sm:$0xf]
        %v526 = vld [vmem:[#allocation5 + $0x108] sm:$0xf]
        %v527 = vld [vmem:[#allocation5 + $0x10c] sm:$0xf]
        %v528 = vld [vmem:[#allocation5 + $0x110] sm:$0xf]
        %v529 = vld [vmem:[#allocation5 + $0x114] sm:$0xf]
        %v530 = vld [vmem:[#allocation5 + $0x118] sm:$0xf]
        %v531 = vld [vmem:[#allocation5 + $0x11c] sm:$0xf]
        %v532 = vld [vmem:[#allocation5 + $0x120] sm:$0xf]
        %v533 = vld [vmem:[#allocation5 + $0x124] sm:$0xf]
        %v534 = vld [vmem:[#allocation5 + $0x128] sm:$0xf]
        %v535 = vld [vmem:[#allocation5 + $0x12c] sm:$0xf]
        %v536 = vld [vmem:[#allocation5 + $0x130] sm:$0xf]
        %v537 = vld [vmem:[#allocation5 + $0x134] sm:$0xf]
        %v538 = vld [vmem:[#allocation5 + $0x138] sm:$0xf]
        %v539 = vld [vmem:[#allocation5 + $0x13c] sm:$0xf]
        %v540 = vld [vmem:[#allocation5 + $0x140] sm:$0xf]
        %v541 = vld [vmem:[#allocation5 + $0x144] sm:$0xf]
        %v542 = vld [vmem:[#allocation5 + $0x148] sm:$0xf]
        %v543 = vld [vmem:[#allocation5 + $0x14c] sm:$0xf]
        %v544 = vld [vmem:[#allocation5 + $0x150] sm:$0xf]
        %v545 = vld [vmem:[#allocation5 + $0x154] sm:$0xf]
        %v546 = vld [vmem:[#allocation5 + $0x158] sm:$0xf]
        %v547 = vld [vmem:[#allocation5 + $0x15c] sm:$0xf]
        %v548 = vld [vmem:[#allocation5 + $0x160] sm:$0xf]
        %v549 = vld [vmem:[#allocation5 + $0x164] sm:$0xf]
        %v550 = vld [vmem:[#allocation5 + $0x168] sm:$0xf]
        %v551 = vld [vmem:[#allocation5 + $0x16c] sm:$0xf]
        %v552 = vld [vmem:[#allocation5 + $0x170] sm:$0xf]
        %v553 = vld [vmem:[#allocation5 + $0x174] sm:$0xf]
        %v554 = vld [vmem:[#allocation5 + $0x178] sm:$0xf]
        %v555 = vld [vmem:[#allocation5 + $0x17c] sm:$0xf]
        %v556 = vld [vmem:[#allocation5 + $0x180] sm:$0xf]
        %v557 = vld [vmem:[#allocation5 + $0x184] sm:$0xf]
        %v558 = vld [vmem:[#allocation5 + $0x188] sm:$0xf]
        %v559 = vld [vmem:[#allocation5 + $0x18c] sm:$0xf]
        %v560 = vld [vmem:[#allocation5 + $0x190] sm:$0xf]
        %v561 = vld [vmem:[#allocation5 + $0x194] sm:$0xf]
        %v562 = vld [vmem:[#allocation5 + $0x198] sm:$0xf]
        %v563 = vld [vmem:[#allocation5 + $0x19c] sm:$0xf]
        %v564 = vld [vmem:[#allocation5 + $0x1a0] sm:$0xf]
        %v565 = vld [vmem:[#allocation5 + $0x1a4] sm:$0xf]
        %v566 = vld [vmem:[#allocation5 + $0x1a8] sm:$0xf]
        %v567 = vld [vmem:[#allocation5 + $0x1ac] sm:$0xf]
        %v568 = vld [vmem:[#allocation5 + $0x1b0] sm:$0xf]
        %v569 = vld [vmem:[#allocation5 + $0x1b4] sm:$0xf]
        %v570 = vld [vmem:[#allocation5 + $0x1b8] sm:$0xf]
        %v571 = vld [vmem:[#allocation5 + $0x1bc] sm:$0xf]
        %v572 = vld [vmem:[#allocation5 + $0x1c0] sm:$0xf]
        %v573 = vld [vmem:[#allocation5 + $0x1c4] sm:$0xf]
        %v574 = vld [vmem:[#allocation5 + $0x1c8] sm:$0xf]
        %v575 = vld [vmem:[#allocation5 + $0x1cc] sm:$0xf]
        %v576 = vld [vmem:[#allocation5 + $0x1d0] sm:$0xf]
        %v577 = vld [vmem:[#allocation5 + $0x1d4] sm:$0xf]
        %v578 = vld [vmem:[#allocation5 + $0x1d8] sm:$0xf]
        %v579 = vld [vmem:[#allocation5 + $0x1dc] sm:$0xf]
        %v580 = vld [vmem:[#allocation5 + $0x1e0] sm:$0xf]
        %v581 = vld [vmem:[#allocation5 + $0x1e4] sm:$0xf]
        %v582 = vld [vmem:[#allocation5 + $0x1e8] sm:$0xf]
        %v583 = vld [vmem:[#allocation5 + $0x1ec] sm:$0xf]
        %v584 = vld [vmem:[#allocation5 + $0x1f0] sm:$0xf]
        %v585 = vld [vmem:[#allocation5 + $0x1f4] sm:$0xf]
        %v586 = vld [vmem:[#allocation5 + $0x1f8] sm:$0xf]
        %v587 = vld [vmem:[#allocation5 + $0x1fc] sm:$0xf]
        %v588 = vld [vmem:[#allocation7] sm:$0x1]
        %v590 = vlaneseq
        %v591 = vshrl.u32 %v590, 7
        %v592 = vsub.s32 0, %v591
        %v593 = vrot.slane %v588, %v592
        %v599 = vunpack.c.l.b16 %v456
        %v600 = vunpack.c.h.b16 %v456
        %v601 = vunpack.c.l.b16 %v457
        %v602 = vunpack.c.h.b16 %v457
        %v603 = vunpack.c.l.b16 %v458
        %v604 = vunpack.c.h.b16 %v458
        %v605 = vunpack.c.l.b16 %v459
        %v606 = vunpack.c.h.b16 %v459
        %v607 = vpack.c.b16 %v599, %v599
        %v608 = vpack.c.b16 %v600, %v600
        %v609 = vpack.c.b16 %v601, %v601
        %v610 = vpack.c.b16 %v602, %v602
        %v611 = vpack.c.b16 %v603, %v603
        %v612 = vpack.c.b16 %v604, %v604
        %v613 = vpack.c.b16 %v605, %v605
        %v614 = vpack.c.b16 %v606, %v606
        %v751 = vunpack.c.l.b16 %v460
        %v752 = vunpack.c.l.b16 %v461
        %v753 = vunpack.c.l.b16 %v462
        %v754 = vunpack.c.l.b16 %v463
        %v755 = vunpack.c.l.b16 %v464
        %v756 = vunpack.c.l.b16 %v465
        %v757 = vunpack.c.l.b16 %v466
        %v758 = vunpack.c.l.b16 %v467
        %v759 = vunpack.c.l.b16 %v468
        %v760 = vunpack.c.l.b16 %v469
        %v761 = vunpack.c.l.b16 %v470
        %v762 = vunpack.c.l.b16 %v471
        %v763 = vunpack.c.l.b16 %v472
        %v764 = vunpack.c.l.b16 %v473
        %v765 = vunpack.c.l.b16 %v474
        %v766 = vunpack.c.l.b16 %v475
        %v767 = vunpack.c.l.b16 %v476
        %v768 = vunpack.c.l.b16 %v477
        %v769 = vunpack.c.l.b16 %v478
        %v770 = vunpack.c.l.b16 %v479
        %v771 = vunpack.c.l.b16 %v480
        %v772 = vunpack.c.l.b16 %v481
        %v773 = vunpack.c.l.b16 %v482
        %v774 = vunpack.c.l.b16 %v483
        %v775 = vunpack.c.l.b16 %v484
        %v776 = vunpack.c.l.b16 %v485
        %v777 = vunpack.c.l.b16 %v486
        %v778 = vunpack.c.l.b16 %v487
        %v779 = vunpack.c.l.b16 %v488
        %v780 = vunpack.c.l.b16 %v489
        %v781 = vunpack.c.l.b16 %v490
        %v782 = vunpack.c.l.b16 %v491
        %v783 = vunpack.c.l.b16 %v492
        %v784 = vunpack.c.l.b16 %v493
        %v785 = vunpack.c.l.b16 %v494
        %v786 = vunpack.c.l.b16 %v495
        %v787 = vunpack.c.l.b16 %v496
        %v788 = vunpack.c.l.b16 %v497
        %v789 = vunpack.c.l.b16 %v498
        %v790 = vunpack.c.l.b16 %v499
        %v791 = vunpack.c.l.b16 %v500
        %v792 = vunpack.c.l.b16 %v501
        %v793 = vunpack.c.l.b16 %v502
        %v794 = vunpack.c.l.b16 %v503
        %v795 = vunpack.c.l.b16 %v504
        %v796 = vunpack.c.l.b16 %v505
        %v797 = vunpack.c.l.b16 %v506
        %v798 = vunpack.c.l.b16 %v507
        %v799 = vunpack.c.l.b16 %v508
        %v800 = vunpack.c.l.b16 %v509
        %v801 = vunpack.c.l.b16 %v510
        %v802 = vunpack.c.l.b16 %v511
        %v803 = vunpack.c.l.b16 %v512
        %v804 = vunpack.c.l.b16 %v513
        %v805 = vunpack.c.l.b16 %v514
        %v806 = vunpack.c.l.b16 %v515
        %v807 = vunpack.c.l.b16 %v516
        %v808 = vunpack.c.l.b16 %v517
        %v809 = vunpack.c.l.b16 %v518
        %v810 = vunpack.c.l.b16 %v519
        %v811 = vunpack.c.l.b16 %v520
        %v812 = vunpack.c.l.b16 %v521
        %v813 = vunpack.c.l.b16 %v522
        %v814 = vunpack.c.l.b16 %v523
        %v815 = vunpack.c.l.b16 %v524
        %v816 = vunpack.c.l.b16 %v525
        %v817 = vunpack.c.l.b16 %v526
        %v818 = vunpack.c.l.b16 %v527
        %v819 = vunpack.c.l.b16 %v528
        %v820 = vunpack.c.l.b16 %v529
        %v821 = vunpack.c.l.b16 %v530
        %v822 = vunpack.c.l.b16 %v531
        %v823 = vunpack.c.l.b16 %v532
        %v824 = vunpack.c.l.b16 %v533
        %v825 = vunpack.c.l.b16 %v534
        %v826 = vunpack.c.l.b16 %v535
        %v827 = vunpack.c.l.b16 %v536
        %v828 = vunpack.c.l.b16 %v537
        %v829 = vunpack.c.l.b16 %v538
        %v830 = vunpack.c.l.b16 %v539
        %v831 = vunpack.c.l.b16 %v540
        %v832 = vunpack.c.l.b16 %v541
        %v833 = vunpack.c.l.b16 %v542
        %v834 = vunpack.c.l.b16 %v543
        %v835 = vunpack.c.l.b16 %v544
        %v836 = vunpack.c.l.b16 %v545
        %v837 = vunpack.c.l.b16 %v546
        %v838 = vunpack.c.l.b16 %v547
        %v839 = vunpack.c.l.b16 %v548
        %v840 = vunpack.c.l.b16 %v549
        %v841 = vunpack.c.l.b16 %v550
        %v842 = vunpack.c.l.b16 %v551
        %v843 = vunpack.c.l.b16 %v552
        %v844 = vunpack.c.l.b16 %v553
        %v845 = vunpack.c.l.b16 %v554
        %v846 = vunpack.c.l.b16 %v555
        %v847 = vunpack.c.l.b16 %v556
        %v848 = vunpack.c.l.b16 %v557
        %v849 = vunpack.c.l.b16 %v558
        %v850 = vunpack.c.l.b16 %v559
        %v851 = vunpack.c.l.b16 %v560
        %v852 = vunpack.c.l.b16 %v561
        %v853 = vunpack.c.l.b16 %v562
        %v854 = vunpack.c.l.b16 %v563
        %v855 = vunpack.c.l.b16 %v564
        %v856 = vunpack.c.l.b16 %v565
        %v857 = vunpack.c.l.b16 %v566
        %v858 = vunpack.c.l.b16 %v567
        %v859 = vunpack.c.l.b16 %v568
        %v860 = vunpack.c.l.b16 %v569
        %v861 = vunpack.c.l.b16 %v570
        %v862 = vunpack.c.l.b16 %v571
        %v863 = vunpack.c.l.b16 %v572
        %v864 = vunpack.c.l.b16 %v573
        %v865 = vunpack.c.l.b16 %v574
        %v866 = vunpack.c.l.b16 %v575
        %v867 = vunpack.c.l.b16 %v576
        %v868 = vunpack.c.l.b16 %v577
        %v869 = vunpack.c.l.b16 %v578
        %v870 = vunpack.c.l.b16 %v579
        %v871 = vunpack.c.l.b16 %v580
        %v872 = vunpack.c.l.b16 %v581
        %v873 = vunpack.c.l.b16 %v582
        %v874 = vunpack.c.l.b16 %v583
        %v875 = vunpack.c.l.b16 %v584
        %v876 = vunpack.c.l.b16 %v585
        %v877 = vunpack.c.l.b16 %v586
        %v878 = vunpack.c.l.b16 %v587
        %v879 = vpack.c.b16 %v752, %v751
        %v880 = vpack.c.b16 %v754, %v753
        %v881 = vpack.c.b16 %v756, %v755
        %v882 = vpack.c.b16 %v758, %v757
        %v883 = vpack.c.b16 %v760, %v759
        %v884 = vpack.c.b16 %v762, %v761
        %v885 = vpack.c.b16 %v764, %v763
        %v886 = vpack.c.b16 %v766, %v765
        %v887 = vpack.c.b16 %v768, %v767
        %v888 = vpack.c.b16 %v770, %v769
        %v889 = vpack.c.b16 %v772, %v771
        %v890 = vpack.c.b16 %v774, %v773
        %v891 = vpack.c.b16 %v776, %v775
        %v892 = vpack.c.b16 %v778, %v777
        %v893 = vpack.c.b16 %v780, %v779
        %v894 = vpack.c.b16 %v782, %v781
        %v895 = vpack.c.b16 %v784, %v783
        %v896 = vpack.c.b16 %v786, %v785
        %v897 = vpack.c.b16 %v788, %v787
        %v898 = vpack.c.b16 %v790, %v789
        %v899 = vpack.c.b16 %v792, %v791
        %v900 = vpack.c.b16 %v794, %v793
        %v901 = vpack.c.b16 %v796, %v795
        %v902 = vpack.c.b16 %v798, %v797
        %v903 = vpack.c.b16 %v800, %v799
        %v904 = vpack.c.b16 %v802, %v801
        %v905 = vpack.c.b16 %v804, %v803
        %v906 = vpack.c.b16 %v806, %v805
        %v907 = vpack.c.b16 %v808, %v807
        %v908 = vpack.c.b16 %v810, %v809
        %v909 = vpack.c.b16 %v812, %v811
        %v910 = vpack.c.b16 %v814, %v813
        %v911 = vpack.c.b16 %v816, %v815
        %v912 = vpack.c.b16 %v818, %v817
        %v913 = vpack.c.b16 %v820, %v819
        %v914 = vpack.c.b16 %v822, %v821
        %v915 = vpack.c.b16 %v824, %v823
        %v916 = vpack.c.b16 %v826, %v825
        %v917 = vpack.c.b16 %v828, %v827
        %v918 = vpack.c.b16 %v830, %v829
        %v919 = vpack.c.b16 %v832, %v831
        %v920 = vpack.c.b16 %v834, %v833
        %v921 = vpack.c.b16 %v836, %v835
        %v922 = vpack.c.b16 %v838, %v837
        %v923 = vpack.c.b16 %v840, %v839
        %v924 = vpack.c.b16 %v842, %v841
        %v925 = vpack.c.b16 %v844, %v843
        %v926 = vpack.c.b16 %v846, %v845
        %v927 = vpack.c.b16 %v848, %v847
        %v928 = vpack.c.b16 %v850, %v849
        %v929 = vpack.c.b16 %v852, %v851
        %v930 = vpack.c.b16 %v854, %v853
        %v931 = vpack.c.b16 %v856, %v855
        %v932 = vpack.c.b16 %v858, %v857
        %v933 = vpack.c.b16 %v860, %v859
        %v934 = vpack.c.b16 %v862, %v861
        %v935 = vpack.c.b16 %v864, %v863
        %v936 = vpack.c.b16 %v866, %v865
        %v937 = vpack.c.b16 %v868, %v867
        %v938 = vpack.c.b16 %v870, %v869
        %v939 = vpack.c.b16 %v872, %v871
        %v940 = vpack.c.b16 %v874, %v873
        %v941 = vpack.c.b16 %v876, %v875
        %v942 = vpack.c.b16 %v878, %v877
        %1007 = vmatprep.subr.bf16.mxu0 0
        %1008 = vmatpush1.bf16.msra.mxu0 %v879
        %1009 = vmatprep.subr.bf16.mxu0 0
        %1010 = vmatpush1.bf16.msra.mxu0 %v880
        %1011 = vmatprep.subr.bf16.mxu0 0
        %1012 = vmatpush1.bf16.msra.mxu0 %v881
        %1013 = vmatprep.subr.bf16.mxu0 0
        %1014 = vmatpush1.bf16.msra.mxu0 %v882
        %1015 = vmatprep.subr.bf16.mxu0 0
        %1016 = vmatpush1.bf16.msra.mxu0 %v883
        %1017 = vmatprep.subr.bf16.mxu0 0
        %1018 = vmatpush1.bf16.msra.mxu0 %v884
        %1019 = vmatprep.subr.bf16.mxu0 0
        %1020 = vmatpush1.bf16.msra.mxu0 %v885
        %1021 = vmatprep.subr.bf16.mxu0 0
        %1022 = vmatpush1.bf16.msra.mxu0 %v886
        %1023 = vmatprep.subr.bf16.mxu0 0
        %1024 = vmatpush1.bf16.msra.mxu0 %v887
        %1025 = vmatprep.subr.bf16.mxu0 0
        %1026 = vmatpush1.bf16.msra.mxu0 %v888
        %1027 = vmatprep.subr.bf16.mxu0 0
        %1028 = vmatpush1.bf16.msra.mxu0 %v889
        %1029 = vmatprep.subr.bf16.mxu0 0
        %1030 = vmatpush1.bf16.msra.mxu0 %v890
        %1031 = vmatprep.subr.bf16.mxu0 0
        %1032 = vmatpush1.bf16.msra.mxu0 %v891
        %1033 = vmatprep.subr.bf16.mxu0 0
        %1034 = vmatpush1.bf16.msra.mxu0 %v892
        %1035 = vmatprep.subr.bf16.mxu0 0
        %1036 = vmatpush1.bf16.msra.mxu0 %v893
        %1037 = vmatprep.subr.bf16.mxu0 0
        %1038 = vmatpush1.bf16.msra.mxu0 %v894
        %1039 = vmatprep.mubr.bf16.mxu0 %v608
        %1040 = vmatmul.mubr.bf16.gmra.mrb[0].mxu0 %v607
        %v1041 = vpop.f32.mrb[0].mxu0
        %v1042 = vadd.f32 %v593, %v1041
        %v1043 = vpop.f32.mrb[0].mxu0
        %v1044 = vpop.f32.mrb[0].mxu0
        %v1045 = vpop.f32.mrb[0].mxu0
        %1046 = vdwg.mxu0
        %1047 = vmatprep.subr.bf16.mxu0 0
        %1048 = vmatpush1.bf16.msra.mxu0 %v895
        %1049 = vmatprep.subr.bf16.mxu0 0
        %1050 = vmatpush1.bf16.msra.mxu0 %v896
        %1051 = vmatprep.subr.bf16.mxu0 0
        %1052 = vmatpush1.bf16.msra.mxu0 %v897
        %1053 = vmatprep.subr.bf16.mxu0 0
        %1054 = vmatpush1.bf16.msra.mxu0 %v898
        %1055 = vmatprep.subr.bf16.mxu0 0
        %1056 = vmatpush1.bf16.msra.mxu0 %v899
        %1057 = vmatprep.subr.bf16.mxu0 0
        %1058 = vmatpush1.bf16.msra.mxu0 %v900
        %1059 = vmatprep.subr.bf16.mxu0 0
        %1060 = vmatpush1.bf16.msra.mxu0 %v901
        %1061 = vmatprep.subr.bf16.mxu0 0
        %1062 = vmatpush1.bf16.msra.mxu0 %v902
        %1063 = vmatprep.subr.bf16.mxu0 0
        %1064 = vmatpush1.bf16.msra.mxu0 %v903
        %1065 = vmatprep.subr.bf16.mxu0 0
        %1066 = vmatpush1.bf16.msra.mxu0 %v904
        %1067 = vmatprep.subr.bf16.mxu0 0
        %1068 = vmatpush1.bf16.msra.mxu0 %v905
        %1069 = vmatprep.subr.bf16.mxu0 0
        %1070 = vmatpush1.bf16.msra.mxu0 %v906
        %1071 = vmatprep.subr.bf16.mxu0 0
        %1072 = vmatpush1.bf16.msra.mxu0 %v907
        %1073 = vmatprep.subr.bf16.mxu0 0
        %1074 = vmatpush1.bf16.msra.mxu0 %v908
        %1075 = vmatprep.subr.bf16.mxu0 0
        %1076 = vmatpush1.bf16.msra.mxu0 %v909
        %1077 = vmatprep.subr.bf16.mxu0 0
        %1078 = vmatpush1.bf16.msra.mxu0 %v910
        %1079 = vmatprep.mubr.bf16.mxu0 %v610
        %1080 = vmatmul.mubr.bf16.gmra.mrb[0].mxu0 %v609
        %v1081 = vpop.f32.mrb[0].mxu0
        %v1082 = vadd.f32 %v1042, %v1081
        %v1083 = vpop.f32.mrb[0].mxu0
        %v1084 = vpop.f32.mrb[0].mxu0
        %v1085 = vpop.f32.mrb[0].mxu0
        %1086 = vdwg.mxu0
        %1087 = vmatprep.subr.bf16.mxu0 0
        %1088 = vmatpush1.bf16.msra.mxu0 %v911
        %1089 = vmatprep.subr.bf16.mxu0 0
        %1090 = vmatpush1.bf16.msra.mxu0 %v912
        %1091 = vmatprep.subr.bf16.mxu0 0
        %1092 = vmatpush1.bf16.msra.mxu0 %v913
        %1093 = vmatprep.subr.bf16.mxu0 0
        %1094 = vmatpush1.bf16.msra.mxu0 %v914
        %1095 = vmatprep.subr.bf16.mxu0 0
        %1096 = vmatpush1.bf16.msra.mxu0 %v915
        %1097 = vmatprep.subr.bf16.mxu0 0
        %1098 = vmatpush1.bf16.msra.mxu0 %v916
        %1099 = vmatprep.subr.bf16.mxu0 0
        %1100 = vmatpush1.bf16.msra.mxu0 %v917
        %1101 = vmatprep.subr.bf16.mxu0 0
        %1102 = vmatpush1.bf16.msra.mxu0 %v918
        %1103 = vmatprep.subr.bf16.mxu0 0
        %1104 = vmatpush1.bf16.msra.mxu0 %v919
        %1105 = vmatprep.subr.bf16.mxu0 0
        %1106 = vmatpush1.bf16.msra.mxu0 %v920
        %1107 = vmatprep.subr.bf16.mxu0 0
        %1108 = vmatpush1.bf16.msra.mxu0 %v921
        %1109 = vmatprep.subr.bf16.mxu0 0
        %1110 = vmatpush1.bf16.msra.mxu0 %v922
        %1111 = vmatprep.subr.bf16.mxu0 0
        %1112 = vmatpush1.bf16.msra.mxu0 %v923
        %1113 = vmatprep.subr.bf16.mxu0 0
        %1114 = vmatpush1.bf16.msra.mxu0 %v924
        %1115 = vmatprep.subr.bf16.mxu0 0
        %1116 = vmatpush1.bf16.msra.mxu0 %v925
        %1117 = vmatprep.subr.bf16.mxu0 0
        %1118 = vmatpush1.bf16.msra.mxu0 %v926
        %1119 = vmatprep.mubr.bf16.mxu0 %v612
        %1120 = vmatmul.mubr.bf16.gmra.mrb[0].mxu0 %v611
        %v1121 = vpop.f32.mrb[0].mxu0
        %v1122 = vadd.f32 %v1082, %v1121
        %v1123 = vpop.f32.mrb[0].mxu0
        %v1124 = vpop.f32.mrb[0].mxu0
        %v1125 = vpop.f32.mrb[0].mxu0
        %1126 = vdwg.mxu0
        %1127 = vmatprep.subr.bf16.mxu0 0
        %1128 = vmatpush1.bf16.msra.mxu0 %v927
        %1129 = vmatprep.subr.bf16.mxu0 0
        %1130 = vmatpush1.bf16.msra.mxu0 %v928
        %1131 = vmatprep.subr.bf16.mxu0 0
        %1132 = vmatpush1.bf16.msra.mxu0 %v929
        %1133 = vmatprep.subr.bf16.mxu0 0
        %1134 = vmatpush1.bf16.msra.mxu0 %v930
        %1135 = vmatprep.subr.bf16.mxu0 0
        %1136 = vmatpush1.bf16.msra.mxu0 %v931
        %1137 = vmatprep.subr.bf16.mxu0 0
        %1138 = vmatpush1.bf16.msra.mxu0 %v932
        %1139 = vmatprep.subr.bf16.mxu0 0
        %1140 = vmatpush1.bf16.msra.mxu0 %v933
        %1141 = vmatprep.subr.bf16.mxu0 0
        %1142 = vmatpush1.bf16.msra.mxu0 %v934
        %1143 = vmatprep.subr.bf16.mxu0 0
        %1144 = vmatpush1.bf16.msra.mxu0 %v935
        %1145 = vmatprep.subr.bf16.mxu0 0
        %1146 = vmatpush1.bf16.msra.mxu0 %v936
        %1147 = vmatprep.subr.bf16.mxu0 0
        %1148 = vmatpush1.bf16.msra.mxu0 %v937
        %1149 = vmatprep.subr.bf16.mxu0 0
        %1150 = vmatpush1.bf16.msra.mxu0 %v938
        %1151 = vmatprep.subr.bf16.mxu0 0
        %1152 = vmatpush1.bf16.msra.mxu0 %v939
        %1153 = vmatprep.subr.bf16.mxu0 0
        %1154 = vmatpush1.bf16.msra.mxu0 %v940
        %1155 = vmatprep.subr.bf16.mxu0 0
        %1156 = vmatpush1.bf16.msra.mxu0 %v941
        %1157 = vmatprep.subr.bf16.mxu0 0
        %1158 = vmatpush1.bf16.msra.mxu0 %v942
        %1159 = vmatprep.mubr.bf16.mxu0 %v614
        %1160 = vmatmul.mubr.bf16.gmra.mrb[0].mxu0 %v613
        %v1161 = vpop.f32.mrb[0].mxu0
        %v1162 = vadd.f32 %v1122, %v1161
        %v1163 = vpop.f32.mrb[0].mxu0
        %v1164 = vpop.f32.mrb[0].mxu0
        %v1165 = vpop.f32.mrb[0].mxu0
        %1166 = vdwg.mxu0
        %vm1167 = vcmp.ge.f32.partialorder %v1162, 0.0
        %v1168 = vld [vmem:[#allocation8] sm:$0x1]
        %v1170 = vlaneseq
        %v1171 = vshrl.u32 %v1170, 7
        %v1172 = vsub.s32 0, %v1171
        %v1173 = vrot.slane %v1168, %v1172
        %v1175 = vmul.f32 %v1173, %v1162
        %v1176 = vsel %vm1167, %v1162, %v1175
        %v1177 = vpack.c.bf16 %v1176, %v1176
        %v1178 = vld [vmem:[#allocation10] sm:$0xf]
        %v1179 = vld [vmem:[#allocation10 + $0x4] sm:$0xf]
        %v1180 = vld [vmem:[#allocation10 + $0x8] sm:$0xf]
        %v1181 = vld [vmem:[#allocation10 + $0xc] sm:$0xf]
        %v1182 = vld [vmem:[#allocation10 + $0x10] sm:$0xf]
        %v1183 = vld [vmem:[#allocation10 + $0x14] sm:$0xf]
        %v1184 = vld [vmem:[#allocation10 + $0x18] sm:$0xf]
        %v1185 = vld [vmem:[#allocation10 + $0x1c] sm:$0xf]
        %v1186 = vld [vmem:[#allocation10 + $0x20] sm:$0xf]
        %v1187 = vld [vmem:[#allocation10 + $0x24] sm:$0xf]
        %v1188 = vld [vmem:[#allocation10 + $0x28] sm:$0xf]
        %v1189 = vld [vmem:[#allocation10 + $0x2c] sm:$0xf]
        %v1190 = vld [vmem:[#allocation10 + $0x30] sm:$0xf]
        %v1191 = vld [vmem:[#allocation10 + $0x34] sm:$0xf]
        %v1192 = vld [vmem:[#allocation10 + $0x38] sm:$0xf]
        %v1193 = vld [vmem:[#allocation10 + $0x3c] sm:$0xf]
        %v1194 = vld [vmem:[#allocation11] sm:$0x1]
        %v1196 = vlaneseq
        %v1197 = vshrl.u32 %v1196, 7
        %v1198 = vsub.s32 0, %v1197
        %v1199 = vrot.slane %v1194, %v1198
        %v1217 = vunpack.c.l.b16 %v1178
        %v1218 = vunpack.c.l.b16 %v1179
        %v1219 = vunpack.c.l.b16 %v1180
        %v1220 = vunpack.c.l.b16 %v1181
        %v1221 = vunpack.c.l.b16 %v1182
        %v1222 = vunpack.c.l.b16 %v1183
        %v1223 = vunpack.c.l.b16 %v1184
        %v1224 = vunpack.c.l.b16 %v1185
        %v1225 = vunpack.c.l.b16 %v1186
        %v1226 = vunpack.c.l.b16 %v1187
        %v1227 = vunpack.c.l.b16 %v1188
        %v1228 = vunpack.c.l.b16 %v1189
        %v1229 = vunpack.c.l.b16 %v1190
        %v1230 = vunpack.c.l.b16 %v1191
        %v1231 = vunpack.c.l.b16 %v1192
        %v1232 = vunpack.c.l.b16 %v1193
        %v1233 = vpack.c.b16 %v1218, %v1217
        %v1234 = vpack.c.b16 %v1220, %v1219
        %v1235 = vpack.c.b16 %v1222, %v1221
        %v1236 = vpack.c.b16 %v1224, %v1223
        %v1237 = vpack.c.b16 %v1226, %v1225
        %v1238 = vpack.c.b16 %v1228, %v1227
        %v1239 = vpack.c.b16 %v1230, %v1229
        %v1240 = vpack.c.b16 %v1232, %v1231
        %1249 = vmatprep.subr.bf16.mxu0 0
        %1250 = vmatpush1.bf16.msra.mxu0 %v1233
        %1251 = vmatprep.subr.bf16.mxu0 0
        %1252 = vmatpush1.bf16.msra.mxu0 %v1234
        %1253 = vmatprep.subr.bf16.mxu0 0
        %1254 = vmatpush1.bf16.msra.mxu0 %v1235
        %1255 = vmatprep.subr.bf16.mxu0 0
        %1256 = vmatpush1.bf16.msra.mxu0 %v1236
        %1257 = vmatprep.subr.bf16.mxu0 0
        %1258 = vmatpush1.bf16.msra.mxu0 %v1237
        %1259 = vmatprep.subr.bf16.mxu0 0
        %1260 = vmatpush1.bf16.msra.mxu0 %v1238
        %1261 = vmatprep.subr.bf16.mxu0 0
        %1262 = vmatpush1.bf16.msra.mxu0 %v1239
        %1263 = vmatprep.subr.bf16.mxu0 0
        %1264 = vmatpush1.bf16.msra.mxu0 %v1240
        %1265 = vmatprep.subr.bf16.mxu0 0
        %1266 = vmatpush1.bf16.msra.mxu0 0
        %1267 = vmatprep.subr.bf16.mxu0 0
        %1268 = vmatpush1.bf16.msra.mxu0 0
        %1269 = vmatprep.subr.bf16.mxu0 0
        %1270 = vmatpush1.bf16.msra.mxu0 0
        %1271 = vmatprep.subr.bf16.mxu0 0
        %1272 = vmatpush1.bf16.msra.mxu0 0
        %1273 = vmatprep.subr.bf16.mxu0 0
        %1274 = vmatpush1.bf16.msra.mxu0 0
        %1275 = vmatprep.subr.bf16.mxu0 0
        %1276 = vmatpush1.bf16.msra.mxu0 0
        %1277 = vmatprep.subr.bf16.mxu0 0
        %1278 = vmatpush1.bf16.msra.mxu0 0
        %1279 = vmatprep.subr.bf16.mxu0 0
        %1280 = vmatpush1.bf16.msra.mxu0 0
        %1281 = vmatprep.mubr.bf16.mxu0 0
        %1282 = vmatmul.mubr.bf16.gmra.mrb[0].mxu0 %v1177
        %v1283 = vpop.f32.mrb[0].mxu0
        %v1284 = vadd.f32 %v1199, %v1283
        %v1285 = vpop.f32.mrb[0].mxu0
        %v1286 = vpop.f32.mrb[0].mxu0
        %v1287 = vpop.f32.mrb[0].mxu0
        %1288 = vdwg.mxu0
        %vm1289 = vcmp.ge.f32.partialorder %v1284, 0.0
        %v1290 = vld [vmem:[#allocation13] sm:$0x1]
        %v1292 = vlaneseq
        %v1293 = vshrl.u32 %v1292, 7
        %v1294 = vsub.s32 0, %v1293
        %v1295 = vrot.slane %v1290, %v1294
        %v1297 = vmul.f32 %v1295, %v1284
        %v1298 = vsel %vm1289, %v1284, %v1297
        %v1299 = vpack.c.bf16 %v1298, %v1298
        %v1300 = vld [vmem:[#allocation14] sm:$0xf]
        %v1301 = vld [vmem:[#allocation14 + $0x4] sm:$0xf]
        %v1302 = vld [vmem:[#allocation14 + $0x8] sm:$0xf]
        %v1303 = vld [vmem:[#allocation14 + $0xc] sm:$0xf]
        %v1304 = vld [vmem:[#allocation14 + $0x10] sm:$0xf]
        %v1305 = vld [vmem:[#allocation14 + $0x14] sm:$0xf]
        %v1306 = vld [vmem:[#allocation14 + $0x18] sm:$0xf]
        %v1307 = vld [vmem:[#allocation14 + $0x1c] sm:$0xf]
        %v1308 = vld [vmem:[#allocation14 + $0x20] sm:$0xf]
        %v1309 = vld [vmem:[#allocation14 + $0x24] sm:$0xf]
        %v1310 = vld [vmem:[#allocation14 + $0x28] sm:$0xf]
        %v1311 = vld [vmem:[#allocation14 + $0x2c] sm:$0xf]
        %v1312 = vld [vmem:[#allocation14 + $0x30] sm:$0xf]
        %v1313 = vld [vmem:[#allocation14 + $0x34] sm:$0xf]
        %v1314 = vld [vmem:[#allocation14 + $0x38] sm:$0xf]
        %v1315 = vld [vmem:[#allocation14 + $0x3c] sm:$0xf]
        %v1316 = vld [vmem:[#allocation16] sm:$0x1]
        %v1318 = vlaneseq
        %v1319 = vshrl.u32 %v1318, 7
        %v1320 = vsub.s32 0, %v1319
        %v1321 = vrot.slane %v1316, %v1320
        %v1339 = vunpack.c.l.b16 %v1300
        %v1340 = vunpack.c.l.b16 %v1301
        %v1341 = vunpack.c.l.b16 %v1302
        %v1342 = vunpack.c.l.b16 %v1303
        %v1343 = vunpack.c.l.b16 %v1304
        %v1344 = vunpack.c.l.b16 %v1305
        %v1345 = vunpack.c.l.b16 %v1306
        %v1346 = vunpack.c.l.b16 %v1307
        %v1347 = vunpack.c.l.b16 %v1308
        %v1348 = vunpack.c.l.b16 %v1309
        %v1349 = vunpack.c.l.b16 %v1310
        %v1350 = vunpack.c.l.b16 %v1311
        %v1351 = vunpack.c.l.b16 %v1312
        %v1352 = vunpack.c.l.b16 %v1313
        %v1353 = vunpack.c.l.b16 %v1314
        %v1354 = vunpack.c.l.b16 %v1315
        %v1355 = vpack.c.b16 %v1340, %v1339
        %v1356 = vpack.c.b16 %v1342, %v1341
        %v1357 = vpack.c.b16 %v1344, %v1343
        %v1358 = vpack.c.b16 %v1346, %v1345
        %v1359 = vpack.c.b16 %v1348, %v1347
        %v1360 = vpack.c.b16 %v1350, %v1349
        %v1361 = vpack.c.b16 %v1352, %v1351
        %v1362 = vpack.c.b16 %v1354, %v1353
        %1371 = vmatprep.subr.bf16.mxu0 0
        %1372 = vmatpush1.bf16.msra.mxu0 %v1355
        %1373 = vmatprep.subr.bf16.mxu0 0
        %1374 = vmatpush1.bf16.msra.mxu0 %v1356
        %1375 = vmatprep.subr.bf16.mxu0 0
        %1376 = vmatpush1.bf16.msra.mxu0 %v1357
        %1377 = vmatprep.subr.bf16.mxu0 0
        %1378 = vmatpush1.bf16.msra.mxu0 %v1358
        %1379 = vmatprep.subr.bf16.mxu0 0
        %1380 = vmatpush1.bf16.msra.mxu0 %v1359
        %1381 = vmatprep.subr.bf16.mxu0 0
        %1382 = vmatpush1.bf16.msra.mxu0 %v1360
        %1383 = vmatprep.subr.bf16.mxu0 0
        %1384 = vmatpush1.bf16.msra.mxu0 %v1361
        %1385 = vmatprep.subr.bf16.mxu0 0
        %1386 = vmatpush1.bf16.msra.mxu0 %v1362
        %1387 = vmatprep.subr.bf16.mxu0 0
        %1388 = vmatpush1.bf16.msra.mxu0 0
        %1389 = vmatprep.subr.bf16.mxu0 0
        %1390 = vmatpush1.bf16.msra.mxu0 0
        %1391 = vmatprep.subr.bf16.mxu0 0
        %1392 = vmatpush1.bf16.msra.mxu0 0
        %1393 = vmatprep.subr.bf16.mxu0 0
        %1394 = vmatpush1.bf16.msra.mxu0 0
        %1395 = vmatprep.subr.bf16.mxu0 0
        %1396 = vmatpush1.bf16.msra.mxu0 0
        %1397 = vmatprep.subr.bf16.mxu0 0
        %1398 = vmatpush1.bf16.msra.mxu0 0
        %1399 = vmatprep.subr.bf16.mxu0 0
        %1400 = vmatpush1.bf16.msra.mxu0 0
        %1401 = vmatprep.subr.bf16.mxu0 0
        %1402 = vmatpush1.bf16.msra.mxu0 0
        %1403 = vmatprep.mubr.bf16.mxu0 0
        %1404 = vmatmul.mubr.bf16.gmra.mrb[0].mxu0 %v1299
        %v1405 = vpop.f32.mrb[0].mxu0
        %v1406 = vadd.f32 %v1321, %v1405
        %v1407 = vpop.f32.mrb[0].mxu0
        %v1408 = vpop.f32.mrb[0].mxu0
        %v1409 = vpop.f32.mrb[0].mxu0
        %1410 = vdwg.mxu0
        %1411 = vmax.xlane.f32.xlu0 %v1406
        %v1412 = vpop.xlane.xlu0 %1411
        %v1413 = vsub.f32 %v1406, %v1412
        %v1414 = vmul.f32 %v1413, 1.442695
        %v1415 = vpow.pop %v1414
        %v1416 = vld [vmem:[%s388] sm:$0xf]
        %v1417 = vunpack.c.l.bf16 %v1416
        %1419 = vset.pattern.permute.xlu0 0
        %1420 = vperm.xlu0 %1419, %v1415
        %v1421 = vpop.permute.xlu0 %1420
        %v1423 = vmul.f32 %v1421, %v1417
        %v1424 = vld [vmem:[%s388 + $0x4] sm:$0xf]
        %v1425 = vunpack.c.l.bf16 %v1424
        %1426 = vset.pattern.permute.xlu0 1
        %1427 = vperm.xlu0 %1426, %v1415
        %v1428 = vpop.permute.xlu0 %1427
        %v1430 = vmul.f32 %v1428, %v1425
        %v1431 = vadd.f32 %v1423, %v1430
        %v1432 = vld [vmem:[%s388 + $0x8] sm:$0xf]
        %v1433 = vunpack.c.l.bf16 %v1432
        %1434 = vset.pattern.permute.xlu0 2
        %1435 = vperm.xlu0 %1434, %v1415
        %v1436 = vpop.permute.xlu0 %1435
        %v1438 = vmul.f32 %v1436, %v1433
        %v1439 = vadd.f32 %v1431, %v1438
        %v1440 = vld [vmem:[%s388 + $0xc] sm:$0xf]
        %v1441 = vunpack.c.l.bf16 %v1440
        %1442 = vset.pattern.permute.xlu0 3
        %1443 = vperm.xlu0 %1442, %v1415
        %v1444 = vpop.permute.xlu0 %1443
        %v1446 = vmul.f32 %v1444, %v1441
        %v1447 = vadd.f32 %v1439, %v1446
        %v1448 = vld [vmem:[%s388 + $0x10] sm:$0xf]
        %v1449 = vunpack.c.l.bf16 %v1448
        %1450 = vset.pattern.permute.xlu0 4
        %1451 = vperm.xlu0 %1450, %v1415
        %v1452 = vpop.permute.xlu0 %1451
        %v1454 = vmul.f32 %v1452, %v1449
        %v1455 = vadd.f32 %v1447, %v1454
        %v1456 = vld [vmem:[%s388 + $0x14] sm:$0xf]
        %v1457 = vunpack.c.l.bf16 %v1456
        %1458 = vset.pattern.permute.xlu0 5
        %1459 = vperm.xlu0 %1458, %v1415
        %v1460 = vpop.permute.xlu0 %1459
        %v1462 = vmul.f32 %v1460, %v1457
        %v1463 = vadd.f32 %v1455, %v1462
        %v1464 = vld [vmem:[%s388 + $0x18] sm:$0xf]
        %v1465 = vunpack.c.l.bf16 %v1464
        %1466 = vset.pattern.permute.xlu0 6
        %1467 = vperm.xlu0 %1466, %v1415
        %v1468 = vpop.permute.xlu0 %1467
        %v1470 = vmul.f32 %v1468, %v1465
        %v1471 = vadd.f32 %v1463, %v1470
        %v1472 = vld [vmem:[%s388 + $0x1c] sm:$0xf]
        %v1473 = vunpack.c.l.bf16 %v1472
        %1474 = vset.pattern.permute.xlu0 7
        %1475 = vperm.xlu0 %1474, %v1415
        %v1476 = vpop.permute.xlu0 %1475
        %v1478 = vmul.f32 %v1476, %v1473
        %v1479 = vadd.f32 %v1471, %v1478
        %v1480 = vmul.f32 %v1479, %v1479
        %1481 = vadd.xlane.f32.xlu0 %v1480
        %v1482 = vpop.xlane.xlu0 %1481
        %v1483 = vmax.f32 %v1482, 1e-24
        %v1484 = vrsqrt.pop %v1483
        %v1485 = vmul.f32 %v1484, 2.828427
        %v1486 = vmul.f32 %v1479, %v1485
        %1487 = vst [vmem:[%s454] sm:$0xff] %v1486
        %s1488 = sand.u32 %s232, 1
        %s1489 = scalar_lea.sflag [#allocation4], %s1488
        %s1490 = sand.u32 %s232, 1
        %s1491 = smul.addr %s1490, 8
        %s1492 = scalar_lea.vmem [#allocation17], %s1491
        // Predicated region
        $region93: #{tpu_custom_call.1} parent=55 // pred_check
          %p1493 = pneg %p242
        $region94: #{tpu_custom_call.1} parent=55 // pred_check_branch
          %1495 = sbr.rel (%p1493) target = $region96
        $region95: #{tpu_custom_call.1} parent=55 // pred_region
          %s1497 = ssub.s32 128, 128
          %1498 = vsyncadd %s1489, %s1497
          %s1499 = smul.addr %s30, 128
          %s1500 = scalar_lea.hbm %s9, %s1499
          %s1502 = sshll.u32 %s1492, 4
          %s1503 = int_to_ptr.vmem [resolvable:$true] %s1502
          %1505 = dma.vmem_to_hbm [thread:$0]  %s1503, 128, %s1500, %s1489
        $region96: #{tpu_custom_call.1} parent=55 // pred_fallthru
          _
      $region56: #{tpu_custom_call.1} parent=5 // pred_fallthru
        _
      %p1506 = scmp.le.s32.totalorder 2, %s25
      // Predicated region
      $region97: #{tpu_custom_call.1} parent=5 // pred_check
        %p1507 = pneg %p1506
      $region98: #{tpu_custom_call.1} parent=5 // pred_check_branch
        %1509 = sbr.rel (%p1507) target = $region100
      $region99: #{tpu_custom_call.1} parent=5 // pred_region
        %s1510 = ssub.s32 %s25, 2
        // Predicated region
        $region101: #{tpu_custom_call.1} parent=99 // pred_check
          %p1511 = pneg %p248
        $region102: #{tpu_custom_call.1} parent=99 // pred_check_branch
          %1513 = sbr.rel (%p1511) target = $region104
        $region103: #{tpu_custom_call.1} parent=99 // pred_region
          %s1514 = sand.u32 %s233, 1
          %s1515 = scalar_lea.sflag [#allocation4], %s1514
          %s1516 = sand.u32 %s233, 1
          %s1517 = smul.addr %s1516, 8
          %s1518 = scalar_lea.vmem [#allocation17], %s1517
          %1519 = dma.done %s1515, 128
        $region104: #{tpu_custom_call.1} parent=99 // pred_fallthru
          _
      $region100: #{tpu_custom_call.1} parent=5 // pred_fallthru
        _
    $region6: #{tpu_custom_call.1} parent=1 // loop_footer
      %s29 = sadd.s32 1, %s25
    $region7: #{tpu_custom_call.1} parent=1 // loop_footer_branch
      %24 = sbr.rel target = $region3
    $region8: #{tpu_custom_call.1} parent=1 // loop_exit
      _
    %1520 = vsyncpa [#allocation3], 1
    %s1521 = scalar_lea.sflag [#allocation3], 1
    %1522 = vsyncpa %s1521, 1
    %1523 = vsyncpa [#allocation6], 1
    %1524 = vsyncpa [#allocation9], 1
    %1525 = vsyncpa [#allocation12], 1
    %1526 = vsyncpa [#allocation15], 1
    %1527 = vsyncpa [#allocation4], 1
    %s1528 = scalar_lea.sflag [#allocation4], 1
    %1529 = vsyncpa %s1528, 1

</llo_original>
